<compile_context>
chip_gen: v5e
topology: v5e:2x2
jax: 0.10.0
libtpu: 0.0.40
codegen_flags: <defaults>
</compile_context>

<pallas_src>
import functools

import jax
import jax.numpy as jnp
from jax.experimental import pallas as pl
from jax.experimental.pallas import tpu as pltpu

LEAKY_SLOPE = 0.01   # nn.LeakyReLU default
BN_EPS = 1e-5        # nn.BatchNorm1d default


# ----------------------------------------------------------------- pass 1 -----
def _encode_stats_kernel(x_ref, w1_ref, h_ref, stats_ref, *, batch, tile_b):
    """h = x @ W1 (bias dropped; it cancels in BN) + per-tile centered BN stats."""
    i = pl.program_id(0)
    # 256-wide encoder matmul: bf16 operands (w1 pre-cast in wrapper), f32 accumulation.
    h = jnp.dot(x_ref[...].astype(jnp.bfloat16), w1_ref[...],
                preferred_element_type=jnp.float32)

    # Mask rows beyond the real batch (only the last, padded, tile has any).
    row_ids = i * tile_b + jax.lax.broadcasted_iota(jnp.int32, h.shape, 0)
    valid = row_ids < batch
    n_t = jnp.minimum(tile_b, batch - i * tile_b).astype(jnp.float32)

    h_masked = jnp.where(valid, h, 0.0)
    sum_t = jnp.sum(h_masked, axis=0, keepdims=True)          # (1, H)
    mean_t = sum_t / n_t
    diff = jnp.where(valid, h - mean_t, 0.0)
    m2_t = jnp.sum(diff * diff, axis=0, keepdims=True)        # (1, H)

    # Merged per-tile stats output: row 0 = sum, row 1 = centered M2.
    stats_ref[:, 0:1, :] = sum_t[None]
    stats_ref[:, 1:2, :] = m2_t[None]

    # h goes back to HBM in bf16 (stats above were taken from the f32 accumulator).
    h_ref[...] = h.astype(h_ref.dtype)


# ----------------------------------------------------------------- pass 2 -----
def _bn_head_decode_kernel(h_ref, scale_ref, shift_ref, w2_ref, b2_ref,
                           wd_ref, bd_ref, xrec_ref, theta_ref):
    """Folded BN -> LeakyReLU -> Linear(32, Z) -> softmax -> decoder for one tile."""
    h = h_ref[...].astype(jnp.float32)
    hn = h * scale_ref[...] + shift_ref[...]                  # folded BatchNorm
    h2 = jnp.where(hn >= 0.0, hn, LEAKY_SLOPE * hn)           # Dropout(p=0.0) is a no-op

    # Small (32 -> Z) head stays f32.
    z = jnp.dot(h2, w2_ref[...], preferred_element_type=jnp.float32) + b2_ref[...]

    # theta = softmax(z, dim=1); reciprocal on the otherwise-idle EUP slot.
    zmax = jnp.max(z, axis=1, keepdims=True)
    ez = jnp.exp(z - zmax)
    theta = ez * pl.reciprocal(jnp.sum(ez, axis=1, keepdims=True), approx=True)
    theta_ref[...] = theta

    # 256-wide decoder matmul: bf16 operands (wd pre-cast), f32 accumulation.
    xrec_ref[...] = (jnp.dot(theta.astype(jnp.bfloat16), wd_ref[...],
                             preferred_element_type=jnp.float32) + bd_ref[...])


# ----------------------------------------------------------------- wrapper ----
def _pick_batch_tile(batch, target):
    """Whole batch if it fits, else the largest multiple of 8 <= target."""
    if batch <= target:
        return batch
    return max(8, target - (target % 8))


@functools.partial(jax.jit, static_argnames=("block_b",))
def wae_forward(x, params, *, block_b=4096):
    """Full WAE forward. Returns (x_reconst, theta, softmax(celltype_weight))."""
    w1, b1, g, be, w2, b2, wd, bd, cw = params
    del b1  # per-feature constant shift cancels exactly in training-mode BatchNorm
    B, Din = x.shape
    H = w1.shape[1]
    Z = w2.shape[1]
    Dout = wd.shape[1]

    tile_b = _pick_batch_tile(B, block_b)
    num_tiles = pl.cdiv(B, tile_b)          # last tile may be partial (masked in-kernel)
    grid = (num_tiles,)

    row = lambda i: (i, 0)          # batch-tiled arrays
    const = lambda i: (0, 0)        # VMEM-resident weights / biases / folded BN
    tile3 = lambda i: (i, 0, 0)     # per-tile partial stats

    # Weights for the two 256-wide matmuls: cast to bf16 once (not per grid step).
    w1_bf = w1.astype(jnp.bfloat16)
    wd_bf = wd.astype(jnp.bfloat16)

    # ---- pass 1: encoder Linear + per-tile centered BN partial stats -----------
    h, stats = pl.pallas_call(
        functools.partial(_encode_stats_kernel, batch=B, tile_b=tile_b),
        grid=grid,
        in_specs=[pl.BlockSpec((tile_b, Din), row),
                  pl.BlockSpec((Din, H), const)],
        out_specs=(pl.BlockSpec((tile_b, H), row),
                   pl.BlockSpec((1, 2, H), tile3)),
        out_shape=(jax.ShapeDtypeStruct((B, H), jnp.bfloat16),
                   jax.ShapeDtypeStruct((num_tiles, 2, H), jnp.float32)),
        compiler_params=pltpu.CompilerParams(dimension_semantics=("parallel",)),
        cost_estimate=pl.CostEstimate(
            flops=2 * B * Din * H + 6 * B * H,
            transcendentals=0,
            bytes_accessed=4 * B * Din + 2 * Din * H + 2 * B * H
                           + 4 * num_tiles * 2 * H),
    )(x, w1_bf)

    # ---- full-batch BatchNorm statistics via Chan's parallel-variance combine --
    sums = stats[:, 0, :]                              # (num_tiles, H)
    m2s = stats[:, 1, :]                               # (num_tiles, H)
    last_count = B - tile_b * (num_tiles - 1)
    counts = jnp.array([float(tile_b)] * (num_tiles - 1) + [float(last_count)],
                       jnp.float32)                    # (num_tiles,)
    total = jnp.sum(sums, axis=0)                      # (H,)
    mu = total / B
    mean_t = sums / counts[:, None]
    m2 = jnp.sum(m2s, axis=0) + jnp.sum(counts[:, None] * (mean_t - mu[None, :]) ** 2,
                                        axis=0)
    var = m2 / B                                       # biased, training-mode BN
    isd = jax.lax.rsqrt(var + BN_EPS)

    # Fold BN (plus the dropped encoder bias, which cancels) into scale / shift.
    scale = g * isd[None, :]                           # (1, H)
    shift = be - mu[None, :] * scale                   # (1, H)

    # ---- pass 2: folded BN + LeakyReLU + Linear(32,Z) + softmax + decoder ------
    x_rec, theta = pl.pallas_call(
        _bn_head_decode_kernel,
        grid=grid,
        in_specs=[pl.BlockSpec((tile_b, H), row),
                  pl.BlockSpec((1, H), const),       # BN scale
                  pl.BlockSpec((1, H), const),       # BN shift
                  pl.BlockSpec((H, Z), const),       # W2
                  pl.BlockSpec((1, Z), const),       # b2
                  pl.BlockSpec((Z, Dout), const),    # Wd (bf16)
                  pl.BlockSpec((1, Dout), const)],   # bd
        out_specs=(pl.BlockSpec((tile_b, Dout), row),
                   pl.BlockSpec((tile_b, Z), row)),
        out_shape=(jax.ShapeDtypeStruct((B, Dout), jnp.float32),
                   jax.ShapeDtypeStruct((B, Z), jnp.float32)),
        compiler_params=pltpu.CompilerParams(dimension_semantics=("parallel",)),
        cost_estimate=pl.CostEstimate(
            flops=2 * B * (H * Z + Z * Dout) + 6 * B * H,
            transcendentals=B * Z,
            bytes_accessed=2 * B * H + 4 * B * (Z + Dout)
                           + 4 * (H * Z + Z + Dout + 2 * H) + 2 * Z * Dout),
    )(h, scale, shift, w2, b2, wd_bf, bd)

    # Batch-independent celltype softmax (Z values): hoisted out of the tiled kernels.
    ct_w = jax.nn.softmax(cw.reshape(-1), axis=0)

    # theta.squeeze() in the original module is a no-op for B > 1, Z > 1.
    return x_rec, theta, ct_w


# ----------------------------------------------------------- params & check ---
def xavier_uniform(key, fan_in, fan_out):
    bound = (6.0 / (fan_in + fan_out)) ** 0.5
    return jax.random.uniform(key, (fan_in, fan_out), jnp.float32, -bound, bound)


def make_params(key, d_in, hidden, z_dim, d_out):
    k1, k2, k3, k4, k5, k6 = jax.random.split(key, 6)
    w1 = xavier_uniform(k1, d_in, hidden)                       # enc Linear 1 (in x out)
    b1 = jax.random.uniform(k2, (1, hidden), jnp.float32, -0.1, 0.1)
    gamma = jnp.ones((1, hidden), jnp.float32)                  # BatchNorm weight
    beta = jnp.zeros((1, hidden), jnp.float32)                  # BatchNorm bias
    w2 = xavier_uniform(k3, hidden, z_dim)                      # enc Linear 2
    b2 = jax.random.uniform(k4, (1, z_dim), jnp.float32, -0.1, 0.1)
    wd = xavier_uniform(k5, z_dim, d_out)                       # decoder Linear
    bd = jax.random.uniform(k6, (1, d_out), jnp.float32, -0.1, 0.1)
    cw = jnp.ones((1, z_dim), jnp.float32)                      # celltype_weight = ones
    return (w1, b1, gamma, beta, w2, b2, wd, bd, cw)


def wae_forward_ref(x, params):
    """Pure-JAX f32 reference (matches the PyTorch training-mode forward)."""
    w1, b1, g, be, w2, b2, wd, bd, cw = params
    h = x @ w1 + b1
    mu = jnp.mean(h, axis=0, keepdims=True)
    var = jnp.mean((h - mu) ** 2, axis=0, keepdims=True)
    hn = (h - mu) / jnp.sqrt(var + BN_EPS) * g + be
    h2 = jnp.where(hn >= 0, hn, LEAKY_SLOPE * hn)
    z = h2 @ w2 + b2
    theta = jax.nn.softmax(z, axis=1)
    x_rec = theta @ wd + bd
    return x_rec, theta, jax.nn.softmax(cw.reshape(-1), axis=0)


if __name__ == "__main__":
    # Small shapes consistent with the module (hidden=32, z_dim=encode_dims[-1]).
    D_IN, HIDDEN, Z_DIM, D_OUT = 256, 32, 16, 256

    key = jax.random.PRNGKey(0)
    k_x1, k_x2, k_p = jax.random.split(key, 3)
    params = make_params(k_p, D_IN, HIDDEN, Z_DIM, D_OUT)

    # Case 1: divisible batch -> 2 full 64-row tiles (exercises the tiled pipeline
    # and the cross-tile BatchNorm-statistics combine).
    x1 = jax.random.normal(k_x1, (128, D_IN), jnp.float32)
    out1 = jax.block_until_ready(wae_forward(x1, params, block_b=64))
    ref1 = wae_forward_ref(x1, params)

    # Case 2: non-divisible batch (200 rows, 64-row tiles) -> exercises the cdiv grid
    # and the masked partial last tile.
    x2 = jax.random.normal(k_x2, (200, D_IN), jnp.float32)
    out2 = jax.block_until_ready(wae_forward(x2, params, block_b=64))
    ref2 = wae_forward_ref(x2, params)

    # Sanity check against the pure-f32 reference (kernel uses bf16 operands for the
    # two 256-wide matmuls and a bf16 h round trip, hence the moderate tolerances).
    for (xr, th, ct), (xr_r, th_r, ct_r) in ((out1, ref1), (out2, ref2)):
        assert jnp.allclose(xr, xr_r, atol=3e-2, rtol=3e-2)
        assert jnp.allclose(th, th_r, atol=3e-2, rtol=3e-2)
        assert jnp.allclose(ct, ct_r, atol=1e-6, rtol=1e-5)

    print("KERNEL_OK")
</pallas_src>

<mosaic_0001>
module attributes {stable_mosaic.version = 11 : i64} {
  func.func @_encode_stats_kernel(%arg0: i32, %arg1: memref<64x256xf32, #tpu.memory_space<vmem>>, %arg2: memref<256x32xbf16, #tpu.memory_space<vmem>>, %arg3: memref<64x32xbf16, #tpu.memory_space<vmem>>, %arg4: memref<1x2x32xf32, #tpu.memory_space<vmem>>) attributes {dimension_semantics = [#tpu.dimension_semantics<parallel>], iteration_bounds = array<i64: 2>, scalar_prefetch = 0 : i64, scratch_operands = 0 : i64, tpu.core_type = #tpu.core_type<tc>, window_params = [{transform_indices = @transform_0, window_bounds = array<i64: 64, 256>}, {pipeline_mode = #tpu.pipeline_mode<synchronous>, transform_indices = @transform_1, window_bounds = array<i64: 256, 32>}, {transform_indices = @transform_2, window_bounds = array<i64: 64, 32>}, {transform_indices = @transform_3, window_bounds = array<i64: 1, 2, 32>}]} {
    %c0 = arith.constant 0 : index
    %c0_0 = arith.constant 0 : index
    %0 = vector.load %arg1[%c0, %c0_0] : memref<64x256xf32, #tpu.memory_space<vmem>>, vector<64x256xf32>
    %1 = arith.truncf %0 : vector<64x256xf32> to vector<64x256xbf16>
    %c0_1 = arith.constant 0 : index
    %c0_2 = arith.constant 0 : index
    %2 = vector.load %arg2[%c0_1, %c0_2] : memref<256x32xbf16, #tpu.memory_space<vmem>>, vector<256x32xbf16>
    %cst = arith.constant dense<0.000000e+00> : vector<64x32xf32>
    %3 = tpu.matmul %1, %2, %cst {dimension_numbers = #tpu.dot_dimension_numbers<[1], [0], [0], [1], [0, 0, 1, 1], [], []>} : vector<64x256xbf16>, vector<256x32xbf16>, vector<64x32xf32> -> vector<64x32xf32>
    %c64_i32 = arith.constant 64 : i32
    %4 = arith.muli %arg0, %c64_i32 : i32
    %5 = tpu.iota {dimensions = array<i32: 0>} : vector<64x32xi32>
    %6 = vector.broadcast %4 : i32 to vector<64x32xi32>
    %7 = arith.addi %6, %5 : vector<64x32xi32>
    %c128_i32 = arith.constant 128 : i32
    %8 = vector.broadcast %c128_i32 : i32 to vector<64x32xi32>
    %9 = arith.cmpi slt, %7, %8 : vector<64x32xi32>
    %c64_i32_3 = arith.constant 64 : i32
    %10 = arith.muli %arg0, %c64_i32_3 : i32
    %c128_i32_4 = arith.constant 128 : i32
    %11 = arith.subi %c128_i32_4, %10 : i32
    %c64_i32_5 = arith.constant 64 : i32
    %12 = arith.minsi %c64_i32_5, %11 : i32
    %13 = arith.sitofp %12 : i32 to f32
    %cst_6 = arith.constant 0.000000e+00 : f32
    %14 = vector.broadcast %cst_6 : f32 to vector<64x32xf32>
    %15 = arith.select %9, %3, %14 : vector<64x32xi1>, vector<64x32xf32>
    %cst_7 = arith.constant dense<0.000000e+00> : vector<32xf32>
    %16 = vector.multi_reduction <add>, %15, %cst_7 [0] : vector<64x32xf32> to vector<32xf32>
    %17 = vector.shape_cast %16 : vector<32xf32> to vector<1x32xf32>
    %18 = vector.broadcast %13 : f32 to vector<1x32xf32>
    %19 = arith.divf %17, %18 : vector<1x32xf32>
    %20 = vector.broadcast %19 : vector<1x32xf32> to vector<64x32xf32>
    %21 = arith.subf %3, %20 : vector<64x32xf32>
    %cst_8 = arith.constant 0.000000e+00 : f32
    %22 = vector.broadcast %cst_8 : f32 to vector<64x32xf32>
    %23 = arith.select %9, %21, %22 : vector<64x32xi1>, vector<64x32xf32>
    %24 = arith.mulf %23, %23 : vector<64x32xf32>
    %cst_9 = arith.constant dense<0.000000e+00> : vector<32xf32>
    %25 = vector.multi_reduction <add>, %24, %cst_9 [0] : vector<64x32xf32> to vector<32xf32>
    %26 = vector.shape_cast %25 : vector<32xf32> to vector<1x32xf32>
    %27 = vector.shape_cast %17 : vector<1x32xf32> to vector<1x1x32xf32>
    %c0_10 = arith.constant 0 : index
    %c0_11 = arith.constant 0 : index
    %c0_12 = arith.constant 0 : index
    %28 = vector.load %arg4[%c0_10, %c0_11, %c0_12] : memref<1x2x32xf32, #tpu.memory_space<vmem>>, vector<1x1x32xf32>
    tpu.vector_store %arg4[%c0_10, %c0_11, %c0_12], %27 {strides = array<i32>} : memref<1x2x32xf32, #tpu.memory_space<vmem>>, vector<1x1x32xf32>,
    %29 = vector.shape_cast %26 : vector<1x32xf32> to vector<1x1x32xf32>
    %c0_13 = arith.constant 0 : index
    %c1 = arith.constant 1 : index
    %c0_14 = arith.constant 0 : index
    %30 = vector.load %arg4[%c0_13, %c1, %c0_14] : memref<1x2x32xf32, #tpu.memory_space<vmem>>, vector<1x1x32xf32>
    tpu.vector_store %arg4[%c0_13, %c1, %c0_14], %29 {strides = array<i32>} : memref<1x2x32xf32, #tpu.memory_space<vmem>>, vector<1x1x32xf32>,
    %31 = arith.truncf %3 : vector<64x32xf32> to vector<64x32xbf16>
    %c0_15 = arith.constant 0 : index
    %c0_16 = arith.constant 0 : index
    %32 = vector.load %arg3[%c0_15, %c0_16] : memref<64x32xbf16, #tpu.memory_space<vmem>>, vector<64x32xbf16>
    tpu.vector_store %arg3[%c0_15, %c0_16], %31 {strides = array<i32>} : memref<64x32xbf16, #tpu.memory_space<vmem>>, vector<64x32xbf16>,
    return
  }
  func.func @transform_0(%arg0: i32) -> (i32, i32) {
    %c0_i32 = arith.constant 0 : i32
    %c0_i32_0 = arith.constant 0 : i32
    return %arg0, %c0_i32 : i32, i32
  }
  func.func @transform_1(%arg0: i32) -> (i32, i32) {
    %c0_i32 = arith.constant 0 : i32
    %c0_i32_0 = arith.constant 0 : i32
    %c0_i32_1 = arith.constant 0 : i32
    return %c0_i32, %c0_i32_0 : i32, i32
  }
  func.func @transform_2(%arg0: i32) -> (i32, i32) {
    %c0_i32 = arith.constant 0 : i32
    %c0_i32_0 = arith.constant 0 : i32
    return %arg0, %c0_i32 : i32, i32
  }
  func.func @transform_3(%arg0: i32) -> (i32, i32, i32) {
    %c0_i32 = arith.constant 0 : i32
    %c0_i32_0 = arith.constant 0 : i32
    %c0_i32_1 = arith.constant 0 : i32
    return %arg0, %c0_i32, %c0_i32_0 : i32, i32, i32
  }
}

module attributes {stable_mosaic.version = 11 : i64} {
  func.func @_bn_head_decode_kernel(%arg0: i32, %arg1: memref<64x32xbf16, #tpu.memory_space<vmem>>, %arg2: memref<1x32xf32, #tpu.memory_space<vmem>>, %arg3: memref<1x32xf32, #tpu.memory_space<vmem>>, %arg4: memref<32x16xf32, #tpu.memory_space<vmem>>, %arg5: memref<1x16xf32, #tpu.memory_space<vmem>>, %arg6: memref<16x256xbf16, #tpu.memory_space<vmem>>, %arg7: memref<1x256xf32, #tpu.memory_space<vmem>>, %arg8: memref<64x256xf32, #tpu.memory_space<vmem>>, %arg9: memref<64x16xf32, #tpu.memory_space<vmem>>) attributes {dimension_semantics = [#tpu.dimension_semantics<parallel>], iteration_bounds = array<i64: 2>, scalar_prefetch = 0 : i64, scratch_operands = 0 : i64, tpu.core_type = #tpu.core_type<tc>, window_params = [{transform_indices = @transform_0, window_bounds = array<i64: 64, 32>}, {pipeline_mode = #tpu.pipeline_mode<synchronous>, transform_indices = @transform_1, window_bounds = array<i64: 1, 32>}, {pipeline_mode = #tpu.pipeline_mode<synchronous>, transform_indices = @transform_2, window_bounds = array<i64: 1, 32>}, {pipeline_mode = #tpu.pipeline_mode<synchronous>, transform_indices = @transform_3, window_bounds = array<i64: 32, 16>}, {pipeline_mode = #tpu.pipeline_mode<synchronous>, transform_indices = @transform_4, window_bounds = array<i64: 1, 16>}, {pipeline_mode = #tpu.pipeline_mode<synchronous>, transform_indices = @transform_5, window_bounds = array<i64: 16, 256>}, {pipeline_mode = #tpu.pipeline_mode<synchronous>, transform_indices = @transform_6, window_bounds = array<i64: 1, 256>}, {transform_indices = @transform_7, window_bounds = array<i64: 64, 256>}, {transform_indices = @transform_8, window_bounds = array<i64: 64, 16>}]} {
    %c0 = arith.constant 0 : index
    %c0_0 = arith.constant 0 : index
    %0 = vector.load %arg1[%c0, %c0_0] : memref<64x32xbf16, #tpu.memory_space<vmem>>, vector<64x32xbf16>
    %1 = arith.extf %0 : vector<64x32xbf16> to vector<64x32xf32>
    %c0_1 = arith.constant 0 : index
    %c0_2 = arith.constant 0 : index
    %2 = vector.load %arg2[%c0_1, %c0_2] : memref<1x32xf32, #tpu.memory_space<vmem>>, vector<1x32xf32>
    %3 = vector.broadcast %2 : vector<1x32xf32> to vector<64x32xf32>
    %4 = arith.mulf %1, %3 : vector<64x32xf32>
    %c0_3 = arith.constant 0 : index
    %c0_4 = arith.constant 0 : index
    %5 = vector.load %arg3[%c0_3, %c0_4] : memref<1x32xf32, #tpu.memory_space<vmem>>, vector<1x32xf32>
    %6 = vector.broadcast %5 : vector<1x32xf32> to vector<64x32xf32>
    %7 = arith.addf %4, %6 : vector<64x32xf32>
    %cst = arith.constant 0.000000e+00 : f32
    %8 = vector.broadcast %cst : f32 to vector<64x32xf32>
    %9 = arith.cmpf oge, %7, %8 : vector<64x32xf32>
    %cst_5 = arith.constant 0.00999999977 : f32
    %10 = vector.broadcast %cst_5 : f32 to vector<64x32xf32>
    %11 = arith.mulf %10, %7 : vector<64x32xf32>
    %12 = arith.select %9, %7, %11 : vector<64x32xi1>, vector<64x32xf32>
    %c0_6 = arith.constant 0 : index
    %c0_7 = arith.constant 0 : index
    %13 = vector.load %arg4[%c0_6, %c0_7] : memref<32x16xf32, #tpu.memory_space<vmem>>, vector<32x16xf32>
    %cst_8 = arith.constant dense<0.000000e+00> : vector<64x16xf32>
    %14 = tpu.matmul %12, %13, %cst_8 {dimension_numbers = #tpu.dot_dimension_numbers<[1], [0], [0], [1], [0, 0, 1, 1], [], []>} : vector<64x32xf32>, vector<32x16xf32>, vector<64x16xf32> -> vector<64x16xf32>
    %c0_9 = arith.constant 0 : index
    %c0_10 = arith.constant 0 : index
    %15 = vector.load %arg5[%c0_9, %c0_10] : memref<1x16xf32, #tpu.memory_space<vmem>>, vector<1x16xf32>
    %16 = vector.broadcast %15 : vector<1x16xf32> to vector<64x16xf32>
    %17 = arith.addf %14, %16 : vector<64x16xf32>
    %cst_11 = arith.constant dense<0xFF800000> : vector<64xf32>
    %18 = vector.multi_reduction <maximumf>, %17, %cst_11 [1] : vector<64x16xf32> to vector<64xf32>
    %19 = vector.shape_cast %18 : vector<64xf32> to vector<64x1xf32>
    %20 = vector.broadcast %19 : vector<64x1xf32> to vector<64x16xf32>
    %21 = arith.subf %17, %20 : vector<64x16xf32>
    %22 = math.exp %21 : vector<64x16xf32>
    %cst_12 = arith.constant dense<0.000000e+00> : vector<64xf32>
    %23 = vector.multi_reduction <add>, %22, %cst_12 [1] : vector<64x16xf32> to vector<64xf32>
    %24 = vector.shape_cast %23 : vector<64xf32> to vector<64x1xf32>
    %25 = tpu.reciprocal %24 {approx = true} : vector<64x1xf32> -> vector<64x1xf32>
    %26 = vector.broadcast %25 : vector<64x1xf32> to vector<64x16xf32>
    %27 = arith.mulf %22, %26 : vector<64x16xf32>
    %c0_13 = arith.constant 0 : index
    %c0_14 = arith.constant 0 : index
    %28 = vector.load %arg9[%c0_13, %c0_14] : memref<64x16xf32, #tpu.memory_space<vmem>>, vector<64x16xf32>
    tpu.vector_store %arg9[%c0_13, %c0_14], %27 {strides = array<i32>} : memref<64x16xf32, #tpu.memory_space<vmem>>, vector<64x16xf32>,
    %29 = arith.truncf %27 : vector<64x16xf32> to vector<64x16xbf16>
    %c0_15 = arith.constant 0 : index
    %c0_16 = arith.constant 0 : index
    %30 = vector.load %arg6[%c0_15, %c0_16] : memref<16x256xbf16, #tpu.memory_space<vmem>>, vector<16x256xbf16>
    %cst_17 = arith.constant dense<0.000000e+00> : vector<64x256xf32>
    %31 = tpu.matmul %29, %30, %cst_17 {dimension_numbers = #tpu.dot_dimension_numbers<[1], [0], [0], [1], [0, 0, 1, 1], [], []>} : vector<64x16xbf16>, vector<16x256xbf16>, vector<64x256xf32> -> vector<64x256xf32>
    %c0_18 = arith.constant 0 : index
    %c0_19 = arith.constant 0 : index
    %32 = vector.load %arg7[%c0_18, %c0_19] : memref<1x256xf32, #tpu.memory_space<vmem>>, vector<1x256xf32>
    %33 = vector.broadcast %32 : vector<1x256xf32> to vector<64x256xf32>
    %34 = arith.addf %31, %33 : vector<64x256xf32>
    %c0_20 = arith.constant 0 : index
    %c0_21 = arith.constant 0 : index
    %35 = vector.load %arg8[%c0_20, %c0_21] : memref<64x256xf32, #tpu.memory_space<vmem>>, vector<64x256xf32>
    tpu.vector_store %arg8[%c0_20, %c0_21], %34 {strides = array<i32>} : memref<64x256xf32, #tpu.memory_space<vmem>>, vector<64x256xf32>,
    return
  }
  func.func @transform_0(%arg0: i32) -> (i32, i32) {
    %c0_i32 = arith.constant 0 : i32
    %c0_i32_0 = arith.constant 0 : i32
    return %arg0, %c0_i32 : i32, i32
  }
  func.func @transform_1(%arg0: i32) -> (i32, i32) {
    %c0_i32 = arith.constant 0 : i32
    %c0_i32_0 = arith.constant 0 : i32
    %c0_i32_1 = arith.constant 0 : i32
    return %c0_i32, %c0_i32_0 : i32, i32
  }
  func.func @transform_2(%arg0: i32) -> (i32, i32) {
    %c0_i32 = arith.constant 0 : i32
    %c0_i32_0 = arith.constant 0 : i32
    %c0_i32_1 = arith.constant 0 : i32
    return %c0_i32, %c0_i32_0 : i32, i32
  }
  func.func @transform_3(%arg0: i32) -> (i32, i32) {
    %c0_i32 = arith.constant 0 : i32
    %c0_i32_0 = arith.constant 0 : i32
    %c0_i32_1 = arith.constant 0 : i32
    return %c0_i32, %c0_i32_0 : i32, i32
  }
  func.func @transform_4(%arg0: i32) -> (i32, i32) {
    %c0_i32 = arith.constant 0 : i32
    %c0_i32_0 = arith.constant 0 : i32
    %c0_i32_1 = arith.constant 0 : i32
    return %c0_i32, %c0_i32_0 : i32, i32
  }
  func.func @transform_5(%arg0: i32) -> (i32, i32) {
    %c0_i32 = arith.constant 0 : i32
    %c0_i32_0 = arith.constant 0 : i32
    %c0_i32_1 = arith.constant 0 : i32
    return %c0_i32, %c0_i32_0 : i32, i32
  }
  func.func @transform_6(%arg0: i32) -> (i32, i32) {
    %c0_i32 = arith.constant 0 : i32
    %c0_i32_0 = arith.constant 0 : i32
    %c0_i32_1 = arith.constant 0 : i32
    return %c0_i32, %c0_i32_0 : i32, i32
  }
  func.func @transform_7(%arg0: i32) -> (i32, i32) {
    %c0_i32 = arith.constant 0 : i32
    %c0_i32_0 = arith.constant 0 : i32
    return %arg0, %c0_i32 : i32, i32
  }
  func.func @transform_8(%arg0: i32) -> (i32, i32) {
    %c0_i32 = arith.constant 0 : i32
    %c0_i32_0 = arith.constant 0 : i32
    return %arg0, %c0_i32 : i32, i32
  }
}

</mosaic_0001>

<llo_original>
// kernel: wae_forward.2
$region0: #{wae_forward.2}
  #allocation0 [shape = 'u32[]', space=smem, size = 0x4, offset = 0x4, fixed_abs, tag = 'smem constant byte address 0x4 - core index']
  #allocation1 [shape = 'u32[72,128]{1,0:T(1,128)}', space=vmem, size = 0x9000, scoped, tag = 'internal scratch']
  %s0 = inlined_call_operand.vmem [shape: f32[128,256], index: 0, kind: input, shape index: {}]
  %s1 = inlined_call_operand.vmem [shape: bf16[256,32], index: 1, kind: input, shape index: {}]
  %s2 = inlined_call_operand.vmem [shape: bf16[128,32], index: 2, kind: output, shape index: {0}]
  %s3 = inlined_call_operand.vmem [shape: f32[2,2,32], index: 3, kind: output, shape index: {1}]
  %4 = xla_tuple %s2, %s3
  %s5 = sld [smem:[#allocation0]]
  $region49: #{wae_forward.2} parent=0
    _
  %s7 = ssub.s32 1, %s5
  %s8 = scalar_select 0, %s7, %s5
  loop: start=0, step=1, limit=4
  $region2: #{wae_forward.2} parent=0 // loop_pre_header
    _
  $region3: #{wae_forward.2} parent=0 // loop_header
    %s10 = sphi 0, %s14
    %p11 = scmp.ge.s32.totalorder %s10, 4
    %s20 = sphi 0, %s22
    %s23 = sphi 0, %s20
    %s24 = sphi 0, %s23
    %s40 = sphi 0, %s24
    %s44 = sphi 0, %s44
    %s46 = sphi 0, %s44
    %s47 = sphi 0, %s46
    %s61 = sphi 0, %s47
    %s67 = sphi 0, %s69
    %s70 = sphi 0, %s67
    %s71 = sphi 0, %s70
    %s87 = sphi 0, %s71
    %s93 = sphi 0, %s95
    %s96 = sphi 0, %s93
    %s97 = sphi 0, %s96
    %s113 = sphi 0, %s97
  $region4: #{wae_forward.2} parent=0 // loop_header_branch
    %13 = sbr.rel (%p11) target = $region8
  $region5: #{wae_forward.2} parent=0 // loop_body
    %s15 = ssub.s32 %s10, 1
    %s16 = ssub.s32 %s10, 2
    %s17 = sadd.s32 %s10, 1
    %s18 = ssub.s32 %s10, %s17
    %p19 = scmp.eq.s32.totalorder %s18, 0
    %s21 = sadd.s32 %s20, 1
    %s22 = scalar_select %p19, %s20, %s21
    %p25 = pneg %p19
    %p26 = scmp.eq.s32.totalorder %s10, 1
    %p27 = por %p25, %p26
    %p28 = scmp.ne.s32.totalorder %s20, %s23
    %p29 = scmp.eq.s32.totalorder %s10, 0
    %p30 = por %p28, %p29
    %p31 = scmp.ne.s32.totalorder %s20, %s23
    %p32 = scmp.eq.s32.totalorder %s15, 1
    %p33 = por %p31, %p32
    %p34 = scmp.ne.s32.totalorder %s23, %s24
    %p35 = scmp.eq.s32.totalorder %s15, 0
    %p36 = por %p34, %p35
    %p37 = scmp.ne.s32.totalorder %s23, %s24
    %p38 = scmp.eq.s32.totalorder %s16, 1
    %p39 = por %p37, %p38
    %p41 = scmp.ne.s32.totalorder %s24, %s40
    %p42 = scmp.eq.s32.totalorder %s16, 0
    %p43 = por %p41, %p42
    %s45 = sadd.s32 %s44, 1
    %p48 = scmp.eq.s32.totalorder %s10, 1
    %p49 = scmp.ne.s32.totalorder %s44, %s46
    %p50 = scmp.eq.s32.totalorder %s10, 0
    %p51 = por %p49, %p50
    %p52 = scmp.ne.s32.totalorder %s44, %s46
    %p53 = scmp.eq.s32.totalorder %s15, 1
    %p54 = por %p52, %p53
    %p55 = scmp.ne.s32.totalorder %s46, %s47
    %p56 = scmp.eq.s32.totalorder %s15, 0
    %p57 = por %p55, %p56
    %p58 = scmp.ne.s32.totalorder %s46, %s47
    %p59 = scmp.eq.s32.totalorder %s16, 1
    %p60 = por %p58, %p59
    %p62 = scmp.ne.s32.totalorder %s47, %s61
    %p63 = scmp.eq.s32.totalorder %s16, 0
    %p64 = por %p62, %p63
    %s65 = ssub.s32 %s10, %s17
    %p66 = scmp.eq.s32.totalorder %s65, 0
    %s68 = sadd.s32 %s67, 1
    %s69 = scalar_select %p66, %s67, %s68
    %p72 = pneg %p66
    %p73 = scmp.eq.s32.totalorder %s10, 1
    %p74 = por %p72, %p73
    %p75 = scmp.ne.s32.totalorder %s67, %s70
    %p76 = scmp.eq.s32.totalorder %s10, 0
    %p77 = por %p75, %p76
    %p78 = scmp.ne.s32.totalorder %s67, %s70
    %p79 = scmp.eq.s32.totalorder %s15, 1
    %p80 = por %p78, %p79
    %p81 = scmp.ne.s32.totalorder %s70, %s71
    %p82 = scmp.eq.s32.totalorder %s15, 0
    %p83 = por %p81, %p82
    %p84 = scmp.ne.s32.totalorder %s70, %s71
    %p85 = scmp.eq.s32.totalorder %s16, 1
    %p86 = por %p84, %p85
    %p88 = scmp.ne.s32.totalorder %s71, %s87
    %p89 = scmp.eq.s32.totalorder %s16, 0
    %p90 = por %p88, %p89
    %s91 = ssub.s32 %s10, %s17
    %p92 = scmp.eq.s32.totalorder %s91, 0
    %s94 = sadd.s32 %s93, 1
    %s95 = scalar_select %p92, %s93, %s94
    %p98 = pneg %p92
    %p99 = scmp.eq.s32.totalorder %s10, 1
    %p100 = por %p98, %p99
    %p101 = scmp.ne.s32.totalorder %s93, %s96
    %p102 = scmp.eq.s32.totalorder %s10, 0
    %p103 = por %p101, %p102
    %p104 = scmp.ne.s32.totalorder %s93, %s96
    %p105 = scmp.eq.s32.totalorder %s15, 1
    %p106 = por %p104, %p105
    %p107 = scmp.ne.s32.totalorder %s96, %s97
    %p108 = scmp.eq.s32.totalorder %s15, 0
    %p109 = por %p107, %p108
    %p110 = scmp.ne.s32.totalorder %s96, %s97
    %p111 = scmp.eq.s32.totalorder %s16, 1
    %p112 = por %p110, %p111
    %p114 = scmp.ne.s32.totalorder %s97, %s113
    %p115 = scmp.eq.s32.totalorder %s16, 0
    %p116 = por %p114, %p115
    %p117 = scmp.le.s32.totalorder 1, %s10
    %p118 = scmp.lt.s32.totalorder %s10, 3
    %p119 = pnand %p117, %p118
    %p120 = pneg %p119
    // Predicated region
    $region9: #{wae_forward.2} parent=5 // pred_check
      _
    $region10: #{wae_forward.2} parent=5 // pred_check_branch
      %122 = sbr.rel (%p119) target = $region12
    $region11: #{wae_forward.2} parent=5 // pred_region
      %s123 = ssub.s32 %s10, 1
      // Predicated region
      $region13: #{wae_forward.2} parent=11 // pred_check
        %p124 = pneg %p57
      $region14: #{wae_forward.2} parent=11 // pred_check_branch
        %126 = sbr.rel (%p124) target = $region16
      $region15: #{wae_forward.2} parent=11 // pred_region
        _
      $region16: #{wae_forward.2} parent=11 // pred_fallthru
        _
    $region12: #{wae_forward.2} parent=5 // pred_fallthru
      _
    %p127 = scmp.lt.s32.totalorder %s10, 2
    // Predicated region
    $region17: #{wae_forward.2} parent=5 // pred_check
      %p128 = pneg %p127
    $region18: #{wae_forward.2} parent=5 // pred_check_branch
      %130 = sbr.rel (%p128) target = $region20
    $region19: #{wae_forward.2} parent=5 // pred_region
      // Predicated region
      $region21: #{wae_forward.2} parent=19 // pred_check
        %p131 = pneg %p30
      $region22: #{wae_forward.2} parent=19 // pred_check_branch
        %133 = sbr.rel (%p131) target = $region24
      $region23: #{wae_forward.2} parent=19 // pred_region
        %s134 = smul.u32 8, %s10
        %p135 = scmp.lt.s32.totalorder %s134, 15
        %s136 = scalar_select %p135, %s134, 15
        %s137 = smul.addr %s136, 2
        %s138 = smul.addr %s137, 8
        %s139 = scalar_lea.vmem %s0, %s138
        %s140 = smul.u32 8, %s10
      $region24: #{wae_forward.2} parent=19 // pred_fallthru
        _
    $region20: #{wae_forward.2} parent=5 // pred_fallthru
      _
    %p141 = scmp.le.s32.totalorder 1, %s10
    %p142 = scmp.lt.s32.totalorder %s10, 3
    %p143 = pnand %p141, %p142
    %p144 = pneg %p143
    // Predicated region
    $region25: #{wae_forward.2} parent=5 // pred_check
      _
    $region26: #{wae_forward.2} parent=5 // pred_check_branch
      %146 = sbr.rel (%p143) target = $region28
    $region27: #{wae_forward.2} parent=5 // pred_region
      %s147 = ssub.s32 %s10, 1
      %s148 = smul.u32 8, %s15
      %p149 = scmp.lt.s32.totalorder %s148, 15
      %s150 = scalar_select %p149, %s148, 15
      %s151 = smul.addr %s150, 2
      %s152 = smul.addr %s151, 8
      %s153 = scalar_lea.vmem %s0, %s152
      %p154 = pneg %p36
      %p155 = pneg %p33
      %p156 = pneg %p57
      %p157 = pneg %p54
      %p158 = pneg %p83
      %p159 = pneg %p80
      %s160 = smul.u32 8, %s15
      %p161 = scmp.lt.s32.totalorder %s160, 15
      %s162 = scalar_select %p161, %s160, 15
      %s163 = smul.addr %s162, 4
      %s164 = scalar_lea.vmem %s2, %s163
      %p165 = pneg %p109
      %p166 = pneg %p106
      %p167 = scmp.lt.s32.totalorder %s15, 1
      %s168 = scalar_select %p167, %s15, 1
      %s169 = smul.addr %s168, 2
      %s170 = scalar_lea.vmem %s3, %s169
      %s171 = smul.u32 8, %s15
      %p172 = scmp.lt.s32.totalorder %s171, 15
      %s173 = scalar_select %p172, %s171, 15
      %s174 = smul.addr %s173, 2
      %s175 = smul.addr %s174, 8
      %s176 = scalar_lea.vmem %s0, %s175
      %s177 = smul.u32 8, %s15
      %s178 = smul.u32 8, %s15
      %p179 = scmp.lt.s32.totalorder %s178, 15
      %s180 = scalar_select %p179, %s178, 15
      %s181 = smul.addr %s180, 4
      %s182 = scalar_lea.vmem %s2, %s181
      %s183 = smul.u32 8, %s15
      %p184 = scmp.lt.s32.totalorder %s15, 1
      %s185 = scalar_select %p184, %s15, 1
      %s186 = smul.addr %s185, 2
      %s187 = scalar_lea.vmem %s3, %s186
      %v188 = vld [vmem:[%s176] sm:$0xff]
      %v189 = vld [vmem:[%s176 + $0x8] sm:$0xff]
      %v190 = vld [vmem:[%s176 + $0x10] sm:$0xff]
      %v191 = vld [vmem:[%s176 + $0x18] sm:$0xff]
      %v192 = vld [vmem:[%s176 + $0x20] sm:$0xff]
      %v193 = vld [vmem:[%s176 + $0x28] sm:$0xff]
      %v194 = vld [vmem:[%s176 + $0x30] sm:$0xff]
      %v195 = vld [vmem:[%s176 + $0x38] sm:$0xff]
      %v196 = vld [vmem:[%s176 + $0x40] sm:$0xff]
      %v197 = vld [vmem:[%s176 + $0x48] sm:$0xff]
      %v198 = vld [vmem:[%s176 + $0x50] sm:$0xff]
      %v199 = vld [vmem:[%s176 + $0x58] sm:$0xff]
      %v200 = vld [vmem:[%s176 + $0x60] sm:$0xff]
      %v201 = vld [vmem:[%s176 + $0x68] sm:$0xff]
      %v202 = vld [vmem:[%s176 + $0x70] sm:$0xff]
      %v203 = vld [vmem:[%s176 + $0x78] sm:$0xff]
      %v204 = vpack.c.bf16 %v190, %v188
      %v205 = vpack.c.bf16 %v191, %v189
      %v206 = vpack.c.bf16 %v194, %v192
      %v207 = vpack.c.bf16 %v195, %v193
      %v208 = vpack.c.bf16 %v198, %v196
      %v209 = vpack.c.bf16 %v199, %v197
      %v210 = vpack.c.bf16 %v202, %v200
      %v211 = vpack.c.bf16 %v203, %v201
      %v212 = vld [vmem:[%s1] sm:$0xf]
      %v213 = vld [vmem:[%s1 + $0x4] sm:$0xf]
      %v214 = vld [vmem:[%s1 + $0x8] sm:$0xf]
      %v215 = vld [vmem:[%s1 + $0xc] sm:$0xf]
      %v216 = vld [vmem:[%s1 + $0x10] sm:$0xf]
      %v217 = vld [vmem:[%s1 + $0x14] sm:$0xf]
      %v218 = vld [vmem:[%s1 + $0x18] sm:$0xf]
      %v219 = vld [vmem:[%s1 + $0x1c] sm:$0xf]
      %v220 = vld [vmem:[%s1 + $0x20] sm:$0xf]
      %v221 = vld [vmem:[%s1 + $0x24] sm:$0xf]
      %v222 = vld [vmem:[%s1 + $0x28] sm:$0xf]
      %v223 = vld [vmem:[%s1 + $0x2c] sm:$0xf]
      %v224 = vld [vmem:[%s1 + $0x30] sm:$0xf]
      %v225 = vld [vmem:[%s1 + $0x34] sm:$0xf]
      %v226 = vld [vmem:[%s1 + $0x38] sm:$0xf]
      %v227 = vld [vmem:[%s1 + $0x3c] sm:$0xf]
      %v228 = vld [vmem:[%s1 + $0x40] sm:$0xf]
      %v229 = vld [vmem:[%s1 + $0x44] sm:$0xf]
      %v230 = vld [vmem:[%s1 + $0x48] sm:$0xf]
      %v231 = vld [vmem:[%s1 + $0x4c] sm:$0xf]
      %v232 = vld [vmem:[%s1 + $0x50] sm:$0xf]
      %v233 = vld [vmem:[%s1 + $0x54] sm:$0xf]
      %v234 = vld [vmem:[%s1 + $0x58] sm:$0xf]
      %v235 = vld [vmem:[%s1 + $0x5c] sm:$0xf]
      %v236 = vld [vmem:[%s1 + $0x60] sm:$0xf]
      %v237 = vld [vmem:[%s1 + $0x64] sm:$0xf]
      %v238 = vld [vmem:[%s1 + $0x68] sm:$0xf]
      %v239 = vld [vmem:[%s1 + $0x6c] sm:$0xf]
      %v240 = vld [vmem:[%s1 + $0x70] sm:$0xf]
      %v241 = vld [vmem:[%s1 + $0x74] sm:$0xf]
      %v242 = vld [vmem:[%s1 + $0x78] sm:$0xf]
      %v243 = vld [vmem:[%s1 + $0x7c] sm:$0xf]
      %v276 = vunpack.c.l.b16 %v212
      %v277 = vunpack.c.l.b16 %v213
      %v278 = vunpack.c.l.b16 %v214
      %v279 = vunpack.c.l.b16 %v215
      %v280 = vunpack.c.l.b16 %v216
      %v281 = vunpack.c.l.b16 %v217
      %v282 = vunpack.c.l.b16 %v218
      %v283 = vunpack.c.l.b16 %v219
      %v284 = vunpack.c.l.b16 %v220
      %v285 = vunpack.c.l.b16 %v221
      %v286 = vunpack.c.l.b16 %v222
      %v287 = vunpack.c.l.b16 %v223
      %v288 = vunpack.c.l.b16 %v224
      %v289 = vunpack.c.l.b16 %v225
      %v290 = vunpack.c.l.b16 %v226
      %v291 = vunpack.c.l.b16 %v227
      %v292 = vunpack.c.l.b16 %v228
      %v293 = vunpack.c.l.b16 %v229
      %v294 = vunpack.c.l.b16 %v230
      %v295 = vunpack.c.l.b16 %v231
      %v296 = vunpack.c.l.b16 %v232
      %v297 = vunpack.c.l.b16 %v233
      %v298 = vunpack.c.l.b16 %v234
      %v299 = vunpack.c.l.b16 %v235
      %v300 = vunpack.c.l.b16 %v236
      %v301 = vunpack.c.l.b16 %v237
      %v302 = vunpack.c.l.b16 %v238
      %v303 = vunpack.c.l.b16 %v239
      %v304 = vunpack.c.l.b16 %v240
      %v305 = vunpack.c.l.b16 %v241
      %v306 = vunpack.c.l.b16 %v242
      %v307 = vunpack.c.l.b16 %v243
      %v308 = vpack.c.b16 %v277, %v276
      %v309 = vpack.c.b16 %v279, %v278
      %v310 = vpack.c.b16 %v281, %v280
      %v311 = vpack.c.b16 %v283, %v282
      %v312 = vpack.c.b16 %v285, %v284
      %v313 = vpack.c.b16 %v287, %v286
      %v314 = vpack.c.b16 %v289, %v288
      %v315 = vpack.c.b16 %v291, %v290
      %v316 = vpack.c.b16 %v293, %v292
      %v317 = vpack.c.b16 %v295, %v294
      %v318 = vpack.c.b16 %v297, %v296
      %v319 = vpack.c.b16 %v299, %v298
      %v320 = vpack.c.b16 %v301, %v300
      %v321 = vpack.c.b16 %v303, %v302
      %v322 = vpack.c.b16 %v305, %v304
      %v323 = vpack.c.b16 %v307, %v306
      %340 = vmatpush.bf16.msra.mxu0 %v315
      %341 = vmatpush.bf16.msra.mxu0 %v314
      %342 = vmatpush.bf16.msra.mxu0 %v313
      %343 = vmatpush.bf16.msra.mxu0 %v312
      %344 = vmatpush.bf16.msra.mxu0 %v311
      %345 = vmatpush.bf16.msra.mxu0 %v310
      %346 = vmatpush.bf16.msra.mxu0 %v309
      %347 = vmatpush.bf16.msra.mxu0 %v308
      %348 = vmatmul.bf16.gmra.mxu0 %v204
      %v349 = vpop.f32.mrf.mxu0
      %v350 = vadd.f32 0.0, %v349
      %v351 = vpop.f32.mrf.mxu0
      %v352 = vadd.f32 0.0, %v351
      %353 = vmatmul.bf16.gmra.mxu0 %v206
      %v354 = vpop.f32.mrf.mxu0
      %v355 = vadd.f32 0.0, %v354
      %v356 = vpop.f32.mrf.mxu0
      %v357 = vadd.f32 0.0, %v356
      %358 = vmatmul.bf16.gmra.mxu0 %v208
      %v359 = vpop.f32.mrf.mxu0
      %v360 = vadd.f32 0.0, %v359
      %v361 = vpop.f32.mrf.mxu0
      %v362 = vadd.f32 0.0, %v361
      %363 = vmatmul.bf16.gmra.mxu0 %v210
      %v364 = vpop.f32.mrf.mxu0
      %v365 = vadd.f32 0.0, %v364
      %v366 = vpop.f32.mrf.mxu0
      %v367 = vadd.f32 0.0, %v366
      %368 = vdwg.mxu0
      %369 = vmatpush.bf16.msra.mxu0 %v323
      %370 = vmatpush.bf16.msra.mxu0 %v322
      %371 = vmatpush.bf16.msra.mxu0 %v321
      %372 = vmatpush.bf16.msra.mxu0 %v320
      %373 = vmatpush.bf16.msra.mxu0 %v319
      %374 = vmatpush.bf16.msra.mxu0 %v318
      %375 = vmatpush.bf16.msra.mxu0 %v317
      %376 = vmatpush.bf16.msra.mxu0 %v316
      %377 = vmatmul.bf16.gmra.mxu0 %v205
      %v378 = vpop.f32.mrf.mxu0
      %v379 = vadd.f32 %v350, %v378
      %v380 = vpop.f32.mrf.mxu0
      %v381 = vadd.f32 %v352, %v380
      %382 = vmatmul.bf16.gmra.mxu0 %v207
      %v383 = vpop.f32.mrf.mxu0
      %v384 = vadd.f32 %v355, %v383
      %v385 = vpop.f32.mrf.mxu0
      %v386 = vadd.f32 %v357, %v385
      %387 = vmatmul.bf16.gmra.mxu0 %v209
      %v388 = vpop.f32.mrf.mxu0
      %v389 = vadd.f32 %v360, %v388
      %v390 = vpop.f32.mrf.mxu0
      %v391 = vadd.f32 %v362, %v390
      %392 = vmatmul.bf16.gmra.mxu0 %v211
      %v393 = vpop.f32.mrf.mxu0
      %v394 = vadd.f32 %v365, %v393
      %v395 = vpop.f32.mrf.mxu0
      %v396 = vadd.f32 %v367, %v395
      %397 = vdwg.mxu0
      %s398 = smul.u32 %s15, 64
      %v399 = vlaneseq
      %v400 = vshrl.u32 %v399, 7
      %v401 = vadd.s32 %v400, 8
      %v402 = vadd.s32 %v400, 16
      %v403 = vadd.s32 %v400, 24
      %v404 = vadd.s32 %v400, 32
      %v405 = vadd.s32 %v400, 40
      %v406 = vadd.s32 %v400, 48
      %v407 = vadd.s32 %v400, 56
      %v408 = vstv %s398
      %v409 = vadd.s32 %v408, %v400
      %v410 = vadd.s32 %v408, %v401
      %v411 = vadd.s32 %v408, %v402
      %v412 = vadd.s32 %v408, %v403
      %v413 = vadd.s32 %v408, %v404
      %v414 = vadd.s32 %v408, %v405
      %v415 = vadd.s32 %v408, %v406
      %v416 = vadd.s32 %v408, %v407
      %vm417 = vcmp.lt.s32.totalorder %v409, 128
      %vm418 = vcmp.lt.s32.totalorder %v410, 128
      %vm419 = vcmp.lt.s32.totalorder %v411, 128
      %vm420 = vcmp.lt.s32.totalorder %v412, 128
      %vm421 = vcmp.lt.s32.totalorder %v413, 128
      %vm422 = vcmp.lt.s32.totalorder %v414, 128
      %vm423 = vcmp.lt.s32.totalorder %v415, 128
      %vm424 = vcmp.lt.s32.totalorder %v416, 128
      %s425 = ssub.s32 128, %s398
      %p426 = scmp.lt.s32.totalorder %s425, 64
      %s427 = scalar_select %p426, %s425, 64
      %s428 = scvt.s32.f32 %s427
      %v429 = vsel %vm417, %v379, 0.0
      %v430 = vsel %vm418, %v381, 0.0
      %v431 = vsel %vm419, %v384, 0.0
      %v432 = vsel %vm420, %v386, 0.0
      %v433 = vsel %vm421, %v389, 0.0
      %v434 = vsel %vm422, %v391, 0.0
      %v435 = vsel %vm423, %v394, 0.0
      %v436 = vsel %vm424, %v396, 0.0
      %vm437 = vcmask 261120
      %v438 = vsel %vm437, %v429, 0.0
      %v439 = vsel %vm437, %v430, 0.0
      %v440 = vadd.f32 %v438, %v439
      %v441 = vsel %vm437, %v431, 0.0
      %v442 = vadd.f32 %v440, %v441
      %v443 = vsel %vm437, %v432, 0.0
      %v444 = vadd.f32 %v442, %v443
      %v445 = vsel %vm437, %v433, 0.0
      %v446 = vadd.f32 %v444, %v445
      %v447 = vsel %vm437, %v434, 0.0
      %v448 = vadd.f32 %v446, %v447
      %v449 = vsel %vm437, %v435, 0.0
      %v450 = vadd.f32 %v448, %v449
      %v451 = vsel %vm437, %v436, 0.0
      %v452 = vadd.f32 %v450, %v451
      %v453 = vrot.slane %v452, 4
      %v454 = vadd.f32 %v452, %v453
      %v455 = vrot.slane %v454, 2
      %v456 = vadd.f32 %v454, %v455
      %v457 = vrot.slane %v456, 1
      %v458 = vadd.f32 %v456, %v457
      %v459 = vstv %s428
      %v460 = vrcp.pop %v459
      %v461 = vmul.f32 %v459, %v460
      %v462 = vsub.f32 1.0, %v461
      %v463 = vmul.f32 %v460, %v462
      %v464 = vadd.f32 %v460, %v463
      %vm465 = vweird.f32 %v459
      %vm466 = vweird.f32 %v460
      %vm467 = vmor %vm465, %vm466
      %v468 = vsel %vm467, %v460, %v464
      %v469 = vand.u32 2147483647, %v459
      %vm470 = vcmp.eq.f32.partialorder %v469, 8.507059e+37
      %v471 = vand.u32 %v459, 2147483648
      %v472 = vor.u32 1.1754944e-38, %v471
      %v473 = vsel %vm470, %v472, %v468
      %v474 = vmul.f32 %v458, %v473
      %v475 = vsub.f32 %v379, %v474
      %v476 = vsub.f32 %v381, %v474
      %v477 = vsub.f32 %v384, %v474
      %v478 = vsub.f32 %v386, %v474
      %v479 = vsub.f32 %v389, %v474
      %v480 = vsub.f32 %v391, %v474
      %v481 = vsub.f32 %v394, %v474
      %v482 = vsub.f32 %v396, %v474
      %v483 = vsel %vm417, %v475, 0.0
      %v484 = vsel %vm418, %v476, 0.0
      %v485 = vsel %vm419, %v477, 0.0
      %v486 = vsel %vm420, %v478, 0.0
      %v487 = vsel %vm421, %v479, 0.0
      %v488 = vsel %vm422, %v480, 0.0
      %v489 = vsel %vm423, %v481, 0.0
      %v490 = vsel %vm424, %v482, 0.0
      %v491 = vmul.f32 %v483, %v483
      %v492 = vmul.f32 %v484, %v484
      %v493 = vmul.f32 %v485, %v485
      %v494 = vmul.f32 %v486, %v486
      %v495 = vmul.f32 %v487, %v487
      %v496 = vmul.f32 %v488, %v488
      %v497 = vmul.f32 %v489, %v489
      %v498 = vmul.f32 %v490, %v490
      %v499 = vsel %vm437, %v491, 0.0
      %v500 = vsel %vm437, %v492, 0.0
      %v501 = vadd.f32 %v499, %v500
      %v502 = vsel %vm437, %v493, 0.0
      %v503 = vadd.f32 %v501, %v502
      %v504 = vsel %vm437, %v494, 0.0
      %v505 = vadd.f32 %v503, %v504
      %v506 = vsel %vm437, %v495, 0.0
      %v507 = vadd.f32 %v505, %v506
      %v508 = vsel %vm437, %v496, 0.0
      %v509 = vadd.f32 %v507, %v508
      %v510 = vsel %vm437, %v497, 0.0
      %v511 = vadd.f32 %v509, %v510
      %v512 = vsel %vm437, %v498, 0.0
      %v513 = vadd.f32 %v511, %v512
      %v514 = vrot.slane %v513, 4
      %v515 = vadd.f32 %v513, %v514
      %v516 = vrot.slane %v515, 2
      %v517 = vadd.f32 %v515, %v516
      %v518 = vrot.slane %v517, 1
      %v519 = vadd.f32 %v517, %v518
      %vm520 = vcmask 253952
      %521 = vst.msk [vmem:[%s187] sm:$0x1] %vm520, %v458
      %522 = vst.msk [vmem:[%s187 + $0x1] sm:$0x1] %vm520, %v519
      %v523 = vpack.c.bf16 %v379, %v379
      %v524 = vpack.c.bf16 %v381, %v381
      %v525 = vpack.c.bf16 %v384, %v384
      %v526 = vpack.c.bf16 %v386, %v386
      %v527 = vpack.c.bf16 %v389, %v389
      %v528 = vpack.c.bf16 %v391, %v391
      %v529 = vpack.c.bf16 %v394, %v394
      %v530 = vpack.c.bf16 %v396, %v396
      %vm531 = vcmask 257024
      %532 = vst.msk [vmem:[%s182] sm:$0xf] %vm531, %v523
      %533 = vst.msk [vmem:[%s182 + $0x4] sm:$0xf] %vm531, %v524
      %534 = vst.msk [vmem:[%s182 + $0x8] sm:$0xf] %vm531, %v525
      %535 = vst.msk [vmem:[%s182 + $0xc] sm:$0xf] %vm531, %v526
      %536 = vst.msk [vmem:[%s182 + $0x10] sm:$0xf] %vm531, %v527
      %537 = vst.msk [vmem:[%s182 + $0x14] sm:$0xf] %vm531, %v528
      %538 = vst.msk [vmem:[%s182 + $0x18] sm:$0xf] %vm531, %v529
      %539 = vst.msk [vmem:[%s182 + $0x1c] sm:$0xf] %vm531, %v530
      %s540 = smul.u32 8, %s15
      %p541 = scmp.lt.s32.totalorder %s540, 15
      %s542 = scalar_select %p541, %s540, 15
      %s543 = smul.addr %s542, 4
      %s544 = scalar_lea.vmem %s2, %s543
      %p545 = scmp.lt.s32.totalorder %s15, 1
      %s546 = scalar_select %p545, %s15, 1
      %s547 = smul.addr %s546, 2
      %s548 = scalar_lea.vmem %s3, %s547
      // Predicated region
      $region29: #{wae_forward.2} parent=27 // pred_check
        %p549 = pneg %p80
      $region30: #{wae_forward.2} parent=27 // pred_check_branch
        %551 = sbr.rel (%p549) target = $region32
      $region31: #{wae_forward.2} parent=27 // pred_region
        %s552 = smul.u32 8, %s15
      $region32: #{wae_forward.2} parent=27 // pred_fallthru
        _
      // Predicated region
      $region33: #{wae_forward.2} parent=27 // pred_check
        %p553 = pneg %p106
      $region34: #{wae_forward.2} parent=27 // pred_check_branch
        %555 = sbr.rel (%p553) target = $region36
      $region35: #{wae_forward.2} parent=27 // pred_region
        _
      $region36: #{wae_forward.2} parent=27 // pred_fallthru
        _
    $region28: #{wae_forward.2} parent=5 // pred_fallthru
      _
    %p556 = scmp.le.s32.totalorder 2, %s10
    // Predicated region
    $region37: #{wae_forward.2} parent=5 // pred_check
      %p557 = pneg %p556
    $region38: #{wae_forward.2} parent=5 // pred_check_branch
      %559 = sbr.rel (%p557) target = $region40
    $region39: #{wae_forward.2} parent=5 // pred_region
      %s560 = ssub.s32 %s10, 2
      // Predicated region
      $region41: #{wae_forward.2} parent=39 // pred_check
        %p561 = pneg %p86
      $region42: #{wae_forward.2} parent=39 // pred_check_branch
        %563 = sbr.rel (%p561) target = $region44
      $region43: #{wae_forward.2} parent=39 // pred_region
        %s564 = smul.u32 8, %s16
        %p565 = scmp.lt.s32.totalorder %s564, 15
        %s566 = scalar_select %p565, %s564, 15
        %s567 = smul.addr %s566, 4
        %s568 = scalar_lea.vmem %s2, %s567
      $region44: #{wae_forward.2} parent=39 // pred_fallthru
        _
      // Predicated region
      $region45: #{wae_forward.2} parent=39 // pred_check
        %p569 = pneg %p112
      $region46: #{wae_forward.2} parent=39 // pred_check_branch
        %571 = sbr.rel (%p569) target = $region48
      $region47: #{wae_forward.2} parent=39 // pred_region
        %p572 = scmp.lt.s32.totalorder %s16, 1
        %s573 = scalar_select %p572, %s16, 1
        %s574 = smul.addr %s573, 2
        %s575 = scalar_lea.vmem %s3, %s574
      $region48: #{wae_forward.2} parent=39 // pred_fallthru
        _
    $region40: #{wae_forward.2} parent=5 // pred_fallthru
      _
  $region6: #{wae_forward.2} parent=0 // loop_footer
    %s14 = sadd.s32 1, %s10
  $region7: #{wae_forward.2} parent=0 // loop_footer_branch
    %9 = sbr.rel target = $region3
  $region8: #{wae_forward.2} parent=0 // loop_exit
    _

// kernel: wae_forward.3
$region0: #{wae_forward.3}
  #allocation0 [shape = 'u32[]', space=smem, size = 0x4, offset = 0x4, fixed_abs, tag = 'smem constant byte address 0x4 - core index']
  #allocation1 [shape = 'u32[72,128]{1,0:T(1,128)}', space=vmem, size = 0x9000, scoped, tag = 'internal scratch']
  %s0 = inlined_call_operand.vmem [shape: bf16[128,32], index: 0, kind: input, shape index: {}]
  %s1 = inlined_call_operand.vmem [shape: f32[1,32], index: 1, kind: input, shape index: {}]
  %s2 = inlined_call_operand.vmem [shape: f32[1,32], index: 2, kind: input, shape index: {}]
  %s3 = inlined_call_operand.vmem [shape: f32[32,16], index: 3, kind: input, shape index: {}]
  %s4 = inlined_call_operand.vmem [shape: f32[1,16], index: 4, kind: input, shape index: {}]
  %s5 = inlined_call_operand.vmem [shape: bf16[16,256], index: 5, kind: input, shape index: {}]
  %s6 = inlined_call_operand.vmem [shape: f32[1,256], index: 6, kind: input, shape index: {}]
  %s7 = inlined_call_operand.hbm [shape: f32[128,256], index: 7, kind: output, shape index: {0}]
  %s8 = inlined_call_operand.vmem [shape: f32[128,16], index: 8, kind: output, shape index: {1}]
  %9 = xla_tuple %s7, %s8
  %s10 = sld [smem:[#allocation0]]
  $region69: #{wae_forward.3} parent=0
    _
  %s12 = ssub.s32 1, %s10
  %s13 = scalar_select 0, %s12, %s10
  $region1: #{wae_forward.3} parent=0
    #allocation2 [shape = 'u8[131072]{0}', space=vmem, size = 0x20000, scoped, tag = 'output window, operand 0']
    #allocation3 [shape = 's32[2]{0}', space=sflag, size = 0x8, scoped, tag = 'scoped memory for wae_forward.3']
    %14 = vsyncpa [#allocation3], 0
    %s15 = scalar_lea.sflag [#allocation3], 1
    %16 = vsyncpa %s15, 0
    loop: start=0, step=1, limit=4
    $region2: #{wae_forward.3} parent=1 // loop_pre_header
      _
    $region3: #{wae_forward.3} parent=1 // loop_header
      %s18 = sphi 0, %s22
      %p19 = scmp.ge.s32.totalorder %s18, 4
      %s28 = sphi 0, %s30
      %s31 = sphi 0, %s28
      %s32 = sphi 0, %s31
      %s48 = sphi 0, %s32
      %s52 = sphi 0, %s52
      %s54 = sphi 0, %s52
      %s55 = sphi 0, %s54
      %s69 = sphi 0, %s55
      %s73 = sphi 0, %s73
      %s75 = sphi 0, %s73
      %s76 = sphi 0, %s75
      %s90 = sphi 0, %s76
      %s94 = sphi 0, %s94
      %s96 = sphi 0, %s94
      %s97 = sphi 0, %s96
      %s111 = sphi 0, %s97
      %s115 = sphi 0, %s115
      %s117 = sphi 0, %s115
      %s118 = sphi 0, %s117
      %s132 = sphi 0, %s118
      %s136 = sphi 0, %s136
      %s138 = sphi 0, %s136
      %s139 = sphi 0, %s138
      %s153 = sphi 0, %s139
      %s157 = sphi 0, %s157
      %s159 = sphi 0, %s157
      %s160 = sphi 0, %s159
      %s174 = sphi 0, %s160
      %s180 = sphi 0, %s182
      %s183 = sphi 0, %s180
      %s184 = sphi 0, %s183
      %s200 = sphi 0, %s184
      %s206 = sphi 0, %s208
      %s209 = sphi 0, %s206
      %s210 = sphi 0, %s209
      %s226 = sphi 0, %s210
    $region4: #{wae_forward.3} parent=1 // loop_header_branch
      %21 = sbr.rel (%p19) target = $region8
    $region5: #{wae_forward.3} parent=1 // loop_body
      %s23 = ssub.s32 %s18, 1
      %s24 = ssub.s32 %s18, 2
      %s25 = sadd.s32 %s18, 1
      %s26 = ssub.s32 %s18, %s25
      %p27 = scmp.eq.s32.totalorder %s26, 0
      %s29 = sadd.s32 %s28, 1
      %s30 = scalar_select %p27, %s28, %s29
      %p33 = pneg %p27
      %p34 = scmp.eq.s32.totalorder %s18, 1
      %p35 = por %p33, %p34
      %p36 = scmp.ne.s32.totalorder %s28, %s31
      %p37 = scmp.eq.s32.totalorder %s18, 0
      %p38 = por %p36, %p37
      %p39 = scmp.ne.s32.totalorder %s28, %s31
      %p40 = scmp.eq.s32.totalorder %s23, 1
      %p41 = por %p39, %p40
      %p42 = scmp.ne.s32.totalorder %s31, %s32
      %p43 = scmp.eq.s32.totalorder %s23, 0
      %p44 = por %p42, %p43
      %p45 = scmp.ne.s32.totalorder %s31, %s32
      %p46 = scmp.eq.s32.totalorder %s24, 1
      %p47 = por %p45, %p46
      %p49 = scmp.ne.s32.totalorder %s32, %s48
      %p50 = scmp.eq.s32.totalorder %s24, 0
      %p51 = por %p49, %p50
      %s53 = sadd.s32 %s52, 1
      %p56 = scmp.eq.s32.totalorder %s18, 1
      %p57 = scmp.ne.s32.totalorder %s52, %s54
      %p58 = scmp.eq.s32.totalorder %s18, 0
      %p59 = por %p57, %p58
      %p60 = scmp.ne.s32.totalorder %s52, %s54
      %p61 = scmp.eq.s32.totalorder %s23, 1
      %p62 = por %p60, %p61
      %p63 = scmp.ne.s32.totalorder %s54, %s55
      %p64 = scmp.eq.s32.totalorder %s23, 0
      %p65 = por %p63, %p64
      %p66 = scmp.ne.s32.totalorder %s54, %s55
      %p67 = scmp.eq.s32.totalorder %s24, 1
      %p68 = por %p66, %p67
      %p70 = scmp.ne.s32.totalorder %s55, %s69
      %p71 = scmp.eq.s32.totalorder %s24, 0
      %p72 = por %p70, %p71
      %s74 = sadd.s32 %s73, 1
      %p77 = scmp.eq.s32.totalorder %s18, 1
      %p78 = scmp.ne.s32.totalorder %s73, %s75
      %p79 = scmp.eq.s32.totalorder %s18, 0
      %p80 = por %p78, %p79
      %p81 = scmp.ne.s32.totalorder %s73, %s75
      %p82 = scmp.eq.s32.totalorder %s23, 1
      %p83 = por %p81, %p82
      %p84 = scmp.ne.s32.totalorder %s75, %s76
      %p85 = scmp.eq.s32.totalorder %s23, 0
      %p86 = por %p84, %p85
      %p87 = scmp.ne.s32.totalorder %s75, %s76
      %p88 = scmp.eq.s32.totalorder %s24, 1
      %p89 = por %p87, %p88
      %p91 = scmp.ne.s32.totalorder %s76, %s90
      %p92 = scmp.eq.s32.totalorder %s24, 0
      %p93 = por %p91, %p92
      %s95 = sadd.s32 %s94, 1
      %p98 = scmp.eq.s32.totalorder %s18, 1
      %p99 = scmp.ne.s32.totalorder %s94, %s96
      %p100 = scmp.eq.s32.totalorder %s18, 0
      %p101 = por %p99, %p100
      %p102 = scmp.ne.s32.totalorder %s94, %s96
      %p103 = scmp.eq.s32.totalorder %s23, 1
      %p104 = por %p102, %p103
      %p105 = scmp.ne.s32.totalorder %s96, %s97
      %p106 = scmp.eq.s32.totalorder %s23, 0
      %p107 = por %p105, %p106
      %p108 = scmp.ne.s32.totalorder %s96, %s97
      %p109 = scmp.eq.s32.totalorder %s24, 1
      %p110 = por %p108, %p109
      %p112 = scmp.ne.s32.totalorder %s97, %s111
      %p113 = scmp.eq.s32.totalorder %s24, 0
      %p114 = por %p112, %p113
      %s116 = sadd.s32 %s115, 1
      %p119 = scmp.eq.s32.totalorder %s18, 1
      %p120 = scmp.ne.s32.totalorder %s115, %s117
      %p121 = scmp.eq.s32.totalorder %s18, 0
      %p122 = por %p120, %p121
      %p123 = scmp.ne.s32.totalorder %s115, %s117
      %p124 = scmp.eq.s32.totalorder %s23, 1
      %p125 = por %p123, %p124
      %p126 = scmp.ne.s32.totalorder %s117, %s118
      %p127 = scmp.eq.s32.totalorder %s23, 0
      %p128 = por %p126, %p127
      %p129 = scmp.ne.s32.totalorder %s117, %s118
      %p130 = scmp.eq.s32.totalorder %s24, 1
      %p131 = por %p129, %p130
      %p133 = scmp.ne.s32.totalorder %s118, %s132
      %p134 = scmp.eq.s32.totalorder %s24, 0
      %p135 = por %p133, %p134
      %s137 = sadd.s32 %s136, 1
      %p140 = scmp.eq.s32.totalorder %s18, 1
      %p141 = scmp.ne.s32.totalorder %s136, %s138
      %p142 = scmp.eq.s32.totalorder %s18, 0
      %p143 = por %p141, %p142
      %p144 = scmp.ne.s32.totalorder %s136, %s138
      %p145 = scmp.eq.s32.totalorder %s23, 1
      %p146 = por %p144, %p145
      %p147 = scmp.ne.s32.totalorder %s138, %s139
      %p148 = scmp.eq.s32.totalorder %s23, 0
      %p149 = por %p147, %p148
      %p150 = scmp.ne.s32.totalorder %s138, %s139
      %p151 = scmp.eq.s32.totalorder %s24, 1
      %p152 = por %p150, %p151
      %p154 = scmp.ne.s32.totalorder %s139, %s153
      %p155 = scmp.eq.s32.totalorder %s24, 0
      %p156 = por %p154, %p155
      %s158 = sadd.s32 %s157, 1
      %p161 = scmp.eq.s32.totalorder %s18, 1
      %p162 = scmp.ne.s32.totalorder %s157, %s159
      %p163 = scmp.eq.s32.totalorder %s18, 0
      %p164 = por %p162, %p163
      %p165 = scmp.ne.s32.totalorder %s157, %s159
      %p166 = scmp.eq.s32.totalorder %s23, 1
      %p167 = por %p165, %p166
      %p168 = scmp.ne.s32.totalorder %s159, %s160
      %p169 = scmp.eq.s32.totalorder %s23, 0
      %p170 = por %p168, %p169
      %p171 = scmp.ne.s32.totalorder %s159, %s160
      %p172 = scmp.eq.s32.totalorder %s24, 1
      %p173 = por %p171, %p172
      %p175 = scmp.ne.s32.totalorder %s160, %s174
      %p176 = scmp.eq.s32.totalorder %s24, 0
      %p177 = por %p175, %p176
      %s178 = ssub.s32 %s18, %s25
      %p179 = scmp.eq.s32.totalorder %s178, 0
      %s181 = sadd.s32 %s180, 1
      %s182 = scalar_select %p179, %s180, %s181
      %p185 = pneg %p179
      %p186 = scmp.eq.s32.totalorder %s18, 1
      %p187 = por %p185, %p186
      %p188 = scmp.ne.s32.totalorder %s180, %s183
      %p189 = scmp.eq.s32.totalorder %s18, 0
      %p190 = por %p188, %p189
      %p191 = scmp.ne.s32.totalorder %s180, %s183
      %p192 = scmp.eq.s32.totalorder %s23, 1
      %p193 = por %p191, %p192
      %p194 = scmp.ne.s32.totalorder %s183, %s184
      %p195 = scmp.eq.s32.totalorder %s23, 0
      %p196 = por %p194, %p195
      %p197 = scmp.ne.s32.totalorder %s183, %s184
      %p198 = scmp.eq.s32.totalorder %s24, 1
      %p199 = por %p197, %p198
      %p201 = scmp.ne.s32.totalorder %s184, %s200
      %p202 = scmp.eq.s32.totalorder %s24, 0
      %p203 = por %p201, %p202
      %s204 = ssub.s32 %s18, %s25
      %p205 = scmp.eq.s32.totalorder %s204, 0
      %s207 = sadd.s32 %s206, 1
      %s208 = scalar_select %p205, %s206, %s207
      %p211 = pneg %p205
      %p212 = scmp.eq.s32.totalorder %s18, 1
      %p213 = por %p211, %p212
      %p214 = scmp.ne.s32.totalorder %s206, %s209
      %p215 = scmp.eq.s32.totalorder %s18, 0
      %p216 = por %p214, %p215
      %p217 = scmp.ne.s32.totalorder %s206, %s209
      %p218 = scmp.eq.s32.totalorder %s23, 1
      %p219 = por %p217, %p218
      %p220 = scmp.ne.s32.totalorder %s209, %s210
      %p221 = scmp.eq.s32.totalorder %s23, 0
      %p222 = por %p220, %p221
      %p223 = scmp.ne.s32.totalorder %s209, %s210
      %p224 = scmp.eq.s32.totalorder %s24, 1
      %p225 = por %p223, %p224
      %p227 = scmp.ne.s32.totalorder %s210, %s226
      %p228 = scmp.eq.s32.totalorder %s24, 0
      %p229 = por %p227, %p228
      %p230 = scmp.le.s32.totalorder 1, %s18
      %p231 = scmp.lt.s32.totalorder %s18, 3
      %p232 = pnand %p230, %p231
      %p233 = pneg %p232
      // Predicated region
      $region9: #{wae_forward.3} parent=5 // pred_check
        _
      $region10: #{wae_forward.3} parent=5 // pred_check_branch
        %235 = sbr.rel (%p232) target = $region12
      $region11: #{wae_forward.3} parent=5 // pred_region
        %s236 = ssub.s32 %s18, 1
        // Predicated region
        $region13: #{wae_forward.3} parent=11 // pred_check
          %p237 = pneg %p65
        $region14: #{wae_forward.3} parent=11 // pred_check_branch
          %239 = sbr.rel (%p237) target = $region16
        $region15: #{wae_forward.3} parent=11 // pred_region
          _
        $region16: #{wae_forward.3} parent=11 // pred_fallthru
          _
        // Predicated region
        $region17: #{wae_forward.3} parent=11 // pred_check
          %p240 = pneg %p86
        $region18: #{wae_forward.3} parent=11 // pred_check_branch
          %242 = sbr.rel (%p240) target = $region20
        $region19: #{wae_forward.3} parent=11 // pred_region
          _
        $region20: #{wae_forward.3} parent=11 // pred_fallthru
          _
        // Predicated region
        $region21: #{wae_forward.3} parent=11 // pred_check
          %p243 = pneg %p107
        $region22: #{wae_forward.3} parent=11 // pred_check_branch
          %245 = sbr.rel (%p243) target = $region24
        $region23: #{wae_forward.3} parent=11 // pred_region
          _
        $region24: #{wae_forward.3} parent=11 // pred_fallthru
          _
        // Predicated region
        $region25: #{wae_forward.3} parent=11 // pred_check
          %p246 = pneg %p128
        $region26: #{wae_forward.3} parent=11 // pred_check_branch
          %248 = sbr.rel (%p246) target = $region28
        $region27: #{wae_forward.3} parent=11 // pred_region
          _
        $region28: #{wae_forward.3} parent=11 // pred_fallthru
          _
        // Predicated region
        $region29: #{wae_forward.3} parent=11 // pred_check
          %p249 = pneg %p149
        $region30: #{wae_forward.3} parent=11 // pred_check_branch
          %251 = sbr.rel (%p249) target = $region32
        $region31: #{wae_forward.3} parent=11 // pred_region
          _
        $region32: #{wae_forward.3} parent=11 // pred_fallthru
          _
        // Predicated region
        $region33: #{wae_forward.3} parent=11 // pred_check
          %p252 = pneg %p170
        $region34: #{wae_forward.3} parent=11 // pred_check_branch
          %254 = sbr.rel (%p252) target = $region36
        $region35: #{wae_forward.3} parent=11 // pred_region
          _
        $region36: #{wae_forward.3} parent=11 // pred_fallthru
          _
      $region12: #{wae_forward.3} parent=5 // pred_fallthru
        _
      %p255 = scmp.lt.s32.totalorder %s18, 2
      // Predicated region
      $region37: #{wae_forward.3} parent=5 // pred_check
        %p256 = pneg %p255
      $region38: #{wae_forward.3} parent=5 // pred_check_branch
        %258 = sbr.rel (%p256) target = $region40
      $region39: #{wae_forward.3} parent=5 // pred_region
        // Predicated region
        $region41: #{wae_forward.3} parent=39 // pred_check
          %p259 = pneg %p38
        $region42: #{wae_forward.3} parent=39 // pred_check_branch
          %261 = sbr.rel (%p259) target = $region44
        $region43: #{wae_forward.3} parent=39 // pred_region
          %s262 = smul.u32 8, %s18
          %p263 = scmp.lt.s32.totalorder %s262, 15
          %s264 = scalar_select %p263, %s262, 15
          %s265 = smul.addr %s264, 4
          %s266 = scalar_lea.vmem %s0, %s265
          %s267 = smul.u32 8, %s18
        $region44: #{wae_forward.3} parent=39 // pred_fallthru
          _
      $region40: #{wae_forward.3} parent=5 // pred_fallthru
        _
      %p268 = scmp.le.s32.totalorder 1, %s18
      %p269 = scmp.lt.s32.totalorder %s18, 3
      %p270 = pnand %p268, %p269
      %p271 = pneg %p270
      // Predicated region
      $region45: #{wae_forward.3} parent=5 // pred_check
        _
      $region46: #{wae_forward.3} parent=5 // pred_check_branch
        %273 = sbr.rel (%p270) target = $region48
      $region47: #{wae_forward.3} parent=5 // pred_region
        %s274 = ssub.s32 %s18, 1
        %s275 = smul.u32 8, %s23
        %p276 = scmp.lt.s32.totalorder %s275, 15
        %s277 = scalar_select %p276, %s275, 15
        %s278 = smul.addr %s277, 4
        %s279 = scalar_lea.vmem %s0, %s278
        %p280 = pneg %p44
        %p281 = pneg %p41
        %p282 = pneg %p65
        %p283 = pneg %p62
        %p284 = pneg %p86
        %p285 = pneg %p83
        %p286 = pneg %p107
        %p287 = pneg %p104
        %p288 = pneg %p128
        %p289 = pneg %p125
        %p290 = pneg %p149
        %p291 = pneg %p146
        %p292 = pneg %p170
        %p293 = pneg %p167
        %p294 = pneg %p196
        %p295 = pneg %p193
        %s296 = sand.u32 %s183, 1
        %s297 = scalar_lea.sflag [#allocation3], %s296
        %s298 = sand.u32 %s183, 1
        %s299 = smul.addr %s298, 128
        %s300 = scalar_lea.vmem [#allocation2], %s299
        %p301 = pneg %p222
        %p302 = pneg %p219
        %s303 = smul.u32 8, %s23
        %p304 = scmp.lt.s32.totalorder %s303, 15
        %s305 = scalar_select %p304, %s303, 15
        %s306 = smul.addr %s305, 8
        %s307 = scalar_lea.vmem %s8, %s306
        %s308 = smul.u32 8, %s23
        %p309 = scmp.lt.s32.totalorder %s308, 15
        %s310 = scalar_select %p309, %s308, 15
        %s311 = smul.addr %s310, 4
        %s312 = scalar_lea.vmem %s0, %s311
        %s313 = smul.u32 8, %s23
        %s314 = smul.u32 8, %s23
        %s315 = smul.u32 8, %s23
        %p316 = scmp.lt.s32.totalorder %s315, 15
        %s317 = scalar_select %p316, %s315, 15
        %s318 = smul.addr %s317, 8
        %s319 = scalar_lea.vmem %s8, %s318
        %s320 = smul.u32 8, %s23
        %v322 = vld [vmem:[%s312] sm:$0xf]
        %v323 = vld [vmem:[%s312 + $0x4] sm:$0xf]
        %v324 = vld [vmem:[%s312 + $0x8] sm:$0xf]
        %v325 = vld [vmem:[%s312 + $0xc] sm:$0xf]
        %v326 = vld [vmem:[%s312 + $0x10] sm:$0xf]
        %v327 = vld [vmem:[%s312 + $0x14] sm:$0xf]
        %v328 = vld [vmem:[%s312 + $0x18] sm:$0xf]
        %v329 = vld [vmem:[%s312 + $0x1c] sm:$0xf]
        %v330 = vunpack.c.l.bf16 %v322
        %v331 = vunpack.c.l.bf16 %v323
        %v332 = vunpack.c.l.bf16 %v324
        %v333 = vunpack.c.l.bf16 %v325
        %v334 = vunpack.c.l.bf16 %v326
        %v335 = vunpack.c.l.bf16 %v327
        %v336 = vunpack.c.l.bf16 %v328
        %v337 = vunpack.c.l.bf16 %v329
        %v338 = vld [vmem:[%s1] sm:$0x1]
        %v340 = vperm.slane %v338, 0
        %v342 = vmul.f32 %v330, %v340
        %v343 = vmul.f32 %v331, %v340
        %v344 = vmul.f32 %v332, %v340
        %v345 = vmul.f32 %v333, %v340
        %v346 = vmul.f32 %v334, %v340
        %v347 = vmul.f32 %v335, %v340
        %v348 = vmul.f32 %v336, %v340
        %v349 = vmul.f32 %v337, %v340
        %v350 = vld [vmem:[%s2] sm:$0x1]
        %v352 = vperm.slane %v350, 0
        %v354 = vadd.f32 %v342, %v352
        %v355 = vadd.f32 %v343, %v352
        %v356 = vadd.f32 %v344, %v352
        %v357 = vadd.f32 %v345, %v352
        %v358 = vadd.f32 %v346, %v352
        %v359 = vadd.f32 %v347, %v352
        %v360 = vadd.f32 %v348, %v352
        %v361 = vadd.f32 %v349, %v352
        %vm362 = vcmp.ge.f32.partialorder %v354, 0.0
        %vm363 = vcmp.ge.f32.partialorder %v355, 0.0
        %vm364 = vcmp.ge.f32.partialorder %v356, 0.0
        %vm365 = vcmp.ge.f32.partialorder %v357, 0.0
        %vm366 = vcmp.ge.f32.partialorder %v358, 0.0
        %vm367 = vcmp.ge.f32.partialorder %v359, 0.0
        %vm368 = vcmp.ge.f32.partialorder %v360, 0.0
        %vm369 = vcmp.ge.f32.partialorder %v361, 0.0
        %v370 = vmul.f32 %v354, 0.01
        %v371 = vmul.f32 %v355, 0.01
        %v372 = vmul.f32 %v356, 0.01
        %v373 = vmul.f32 %v357, 0.01
        %v374 = vmul.f32 %v358, 0.01
        %v375 = vmul.f32 %v359, 0.01
        %v376 = vmul.f32 %v360, 0.01
        %v377 = vmul.f32 %v361, 0.01
        %v378 = vsel %vm362, %v354, %v370
        %v379 = vsel %vm363, %v355, %v371
        %v380 = vsel %vm364, %v356, %v372
        %v381 = vsel %vm365, %v357, %v373
        %v382 = vsel %vm366, %v358, %v374
        %v383 = vsel %vm367, %v359, %v375
        %v384 = vsel %vm368, %v360, %v376
        %v385 = vsel %vm369, %v361, %v377
        %v386 = vld [vmem:[%s3] sm:$0xff]
        %v387 = vld [vmem:[%s3 + $0x8] sm:$0xff]
        %v388 = vld [vmem:[%s3 + $0x10] sm:$0xff]
        %v389 = vld [vmem:[%s3 + $0x18] sm:$0xff]
        %v390 = vld [vmem:[%s4] sm:$0x1]
        %v392 = vperm.slane %v390, 0
        %vm394 = vcmask 261120
        %v396 = vsel %vm394, %v378, 0
        %v399 = vsel %vm394, %v379, 0
        %v402 = vsel %vm394, %v380, 0
        %v405 = vsel %vm394, %v381, 0
        %v408 = vsel %vm394, %v382, 0
        %v411 = vsel %vm394, %v383, 0
        %v414 = vsel %vm394, %v384, 0
        %v417 = vsel %vm394, %v385, 0
        %419 = vmatpush.msra.mxu0 0.0
        %420 = vmatpush.msra.mxu0 0.0
        %421 = vmatpush.msra.mxu0 0.0
        %422 = vmatpush.msra.mxu0 0.0
        %423 = vmatpush.msra.mxu0 0.0
        %424 = vmatpush.msra.mxu0 0.0
        %425 = vmatpush.msra.mxu0 0.0
        %426 = vmatpush.msra.mxu0 0.0
        %427 = vmatpush.msra.mxu0 0.0
        %428 = vmatpush.msra.mxu0 0.0
        %429 = vmatpush.msra.mxu0 0.0
        %430 = vmatpush.msra.mxu0 0.0
        %431 = vmatpush.msra.mxu0 %v389
        %432 = vmatpush.msra.mxu0 %v388
        %433 = vmatpush.msra.mxu0 %v387
        %434 = vmatpush.msra.mxu0 %v386
        %435 = vmatmul.f32.gmra.mxu0 %v396
        %v436 = vpop.f32.mrf.mxu0
        %v437 = vadd.f32 %v392, %v436
        %438 = vmatmul.f32.gmra.mxu0 %v399
        %v439 = vpop.f32.mrf.mxu0
        %v440 = vadd.f32 %v392, %v439
        %441 = vmatmul.f32.gmra.mxu0 %v402
        %v442 = vpop.f32.mrf.mxu0
        %v443 = vadd.f32 %v392, %v442
        %444 = vmatmul.f32.gmra.mxu0 %v405
        %v445 = vpop.f32.mrf.mxu0
        %v446 = vadd.f32 %v392, %v445
        %447 = vmatmul.f32.gmra.mxu0 %v408
        %v448 = vpop.f32.mrf.mxu0
        %v449 = vadd.f32 %v392, %v448
        %450 = vmatmul.f32.gmra.mxu0 %v411
        %v451 = vpop.f32.mrf.mxu0
        %v452 = vadd.f32 %v392, %v451
        %453 = vmatmul.f32.gmra.mxu0 %v414
        %v454 = vpop.f32.mrf.mxu0
        %v455 = vadd.f32 %v392, %v454
        %456 = vmatmul.f32.gmra.mxu0 %v417
        %v457 = vpop.f32.mrf.mxu0
        %v458 = vadd.f32 %v392, %v457
        %459 = vdwg.mxu0
        %vm460 = vcmask 130048
        %v461 = vsel %vm460, %v437, -inf
        %462 = vmax.xlane.f32.xlu0 %v461
        %v463 = vpop.xlane.xlu0 %462
        %v464 = vsel %vm460, %v440, -inf
        %465 = vmax.xlane.f32.xlu0 %v464
        %v466 = vpop.xlane.xlu0 %465
        %v467 = vsel %vm460, %v443, -inf
        %468 = vmax.xlane.f32.xlu0 %v467
        %v469 = vpop.xlane.xlu0 %468
        %v470 = vsel %vm460, %v446, -inf
        %471 = vmax.xlane.f32.xlu0 %v470
        %v472 = vpop.xlane.xlu0 %471
        %v473 = vsel %vm460, %v449, -inf
        %474 = vmax.xlane.f32.xlu0 %v473
        %v475 = vpop.xlane.xlu0 %474
        %v476 = vsel %vm460, %v452, -inf
        %477 = vmax.xlane.f32.xlu0 %v476
        %v478 = vpop.xlane.xlu0 %477
        %v479 = vsel %vm460, %v455, -inf
        %480 = vmax.xlane.f32.xlu0 %v479
        %v481 = vpop.xlane.xlu0 %480
        %v482 = vsel %vm460, %v458, -inf
        %483 = vmax.xlane.f32.xlu0 %v482
        %v484 = vpop.xlane.xlu0 %483
        %v485 = vsub.f32 %v437, %v463
        %v486 = vsub.f32 %v440, %v466
        %v487 = vsub.f32 %v443, %v469
        %v488 = vsub.f32 %v446, %v472
        %v489 = vsub.f32 %v449, %v475
        %v490 = vsub.f32 %v452, %v478
        %v491 = vsub.f32 %v455, %v481
        %v492 = vsub.f32 %v458, %v484
        %v493 = vmul.f32 %v485, 1.442695
        %v494 = vpow.pop %v493
        %v495 = vmul.f32 %v486, 1.442695
        %v496 = vpow.pop %v495
        %v497 = vmul.f32 %v487, 1.442695
        %v498 = vpow.pop %v497
        %v499 = vmul.f32 %v488, 1.442695
        %v500 = vpow.pop %v499
        %v501 = vmul.f32 %v489, 1.442695
        %v502 = vpow.pop %v501
        %v503 = vmul.f32 %v490, 1.442695
        %v504 = vpow.pop %v503
        %v505 = vmul.f32 %v491, 1.442695
        %v506 = vpow.pop %v505
        %v507 = vmul.f32 %v492, 1.442695
        %v508 = vpow.pop %v507
        %v509 = vsel %vm460, %v494, 0.0
        %510 = vadd.xlane.f32.xlu0 %v509
        %v511 = vpop.xlane.xlu0 %510
        %v512 = vsel %vm460, %v496, 0.0
        %513 = vadd.xlane.f32.xlu0 %v512
        %v514 = vpop.xlane.xlu0 %513
        %v515 = vsel %vm460, %v498, 0.0
        %516 = vadd.xlane.f32.xlu0 %v515
        %v517 = vpop.xlane.xlu0 %516
        %v518 = vsel %vm460, %v500, 0.0
        %519 = vadd.xlane.f32.xlu0 %v518
        %v520 = vpop.xlane.xlu0 %519
        %v521 = vsel %vm460, %v502, 0.0
        %522 = vadd.xlane.f32.xlu0 %v521
        %v523 = vpop.xlane.xlu0 %522
        %v524 = vsel %vm460, %v504, 0.0
        %525 = vadd.xlane.f32.xlu0 %v524
        %v526 = vpop.xlane.xlu0 %525
        %v527 = vsel %vm460, %v506, 0.0
        %528 = vadd.xlane.f32.xlu0 %v527
        %v529 = vpop.xlane.xlu0 %528
        %v530 = vsel %vm460, %v508, 0.0
        %531 = vadd.xlane.f32.xlu0 %v530
        %v532 = vpop.xlane.xlu0 %531
        %v533 = vrcp.pop %v511
        %v534 = vrcp.pop %v514
        %v535 = vrcp.pop %v517
        %v536 = vrcp.pop %v520
        %v537 = vrcp.pop %v523
        %v538 = vrcp.pop %v526
        %v539 = vrcp.pop %v529
        %v540 = vrcp.pop %v532
        %v541 = vmul.f32 %v494, %v533
        %v542 = vmul.f32 %v496, %v534
        %v543 = vmul.f32 %v498, %v535
        %v544 = vmul.f32 %v500, %v536
        %v545 = vmul.f32 %v502, %v537
        %v546 = vmul.f32 %v504, %v538
        %v547 = vmul.f32 %v506, %v539
        %v548 = vmul.f32 %v508, %v540
        %549 = vst.msk [vmem:[%s319] sm:$0xff] %vm460, %v541
        %550 = vst.msk [vmem:[%s319 + $0x8] sm:$0xff] %vm460, %v542
        %551 = vst.msk [vmem:[%s319 + $0x10] sm:$0xff] %vm460, %v543
        %552 = vst.msk [vmem:[%s319 + $0x18] sm:$0xff] %vm460, %v544
        %553 = vst.msk [vmem:[%s319 + $0x20] sm:$0xff] %vm460, %v545
        %554 = vst.msk [vmem:[%s319 + $0x28] sm:$0xff] %vm460, %v546
        %555 = vst.msk [vmem:[%s319 + $0x30] sm:$0xff] %vm460, %v547
        %556 = vst.msk [vmem:[%s319 + $0x38] sm:$0xff] %vm460, %v548
        %v557 = vpack.c.bf16 %v542, %v541
        %v558 = vpack.c.bf16 %v544, %v543
        %v559 = vpack.c.bf16 %v546, %v545
        %v560 = vpack.c.bf16 %v548, %v547
        %v561 = vld [vmem:[%s5] sm:$0xff]
        %v562 = vld [vmem:[%s5 + $0x8] sm:$0xff]
        %v563 = vld [vmem:[%s6] sm:$0x3]
        %v565 = vperm.slane %v563, 0
        %v566 = vperm.slane %v563, 1
        %v571 = vunpack.c.l.b16 %v561
        %v572 = vunpack.c.h.b16 %v561
        %v573 = vunpack.c.l.b16 %v562
        %v574 = vunpack.c.h.b16 %v562
        %v575 = vpack.c.b16 %v573, %v571
        %v576 = vpack.c.b16 %v574, %v572
        %v580 = vsel %vm460, %v557, 0
        %v583 = vsel %vm460, %v558, 0
        %v586 = vsel %vm460, %v559, 0
        %v589 = vsel %vm460, %v560, 0
        %591 = vmatpush.bf16.msra.mxu0 0
        %592 = vmatpush.bf16.msra.mxu0 0
        %593 = vmatpush.bf16.msra.mxu0 0
        %594 = vmatpush.bf16.msra.mxu0 0
        %595 = vmatpush.bf16.msra.mxu0 0
        %596 = vmatpush.bf16.msra.mxu0 0
        %597 = vmatpush.bf16.msra.mxu0 0
        %598 = vmatpush.bf16.msra.mxu0 %v575
        %599 = vmatmul.bf16.gmra.mxu0 %v580
        %v600 = vpop.f32.mrf.mxu0
        %v601 = vadd.f32 %v565, %v600
        %v602 = vpop.f32.mrf.mxu0
        %v603 = vadd.f32 %v565, %v602
        %604 = vmatmul.bf16.gmra.mxu0 %v583
        %v605 = vpop.f32.mrf.mxu0
        %v606 = vadd.f32 %v565, %v605
        %v607 = vpop.f32.mrf.mxu0
        %v608 = vadd.f32 %v565, %v607
        %609 = vmatmul.bf16.gmra.mxu0 %v586
        %v610 = vpop.f32.mrf.mxu0
        %v611 = vadd.f32 %v565, %v610
        %v612 = vpop.f32.mrf.mxu0
        %v613 = vadd.f32 %v565, %v612
        %614 = vmatmul.bf16.gmra.mxu0 %v589
        %v615 = vpop.f32.mrf.mxu0
        %v616 = vadd.f32 %v565, %v615
        %v617 = vpop.f32.mrf.mxu0
        %v618 = vadd.f32 %v565, %v617
        %619 = vdwg.mxu0
        %620 = vmatpush.bf16.msra.mxu0 0
        %621 = vmatpush.bf16.msra.mxu0 0
        %622 = vmatpush.bf16.msra.mxu0 0
        %623 = vmatpush.bf16.msra.mxu0 0
        %624 = vmatpush.bf16.msra.mxu0 0
        %625 = vmatpush.bf16.msra.mxu0 0
        %626 = vmatpush.bf16.msra.mxu0 0
        %627 = vmatpush.bf16.msra.mxu0 %v576
        %628 = vmatmul.bf16.gmra.mxu0 %v580
        %v629 = vpop.f32.mrf.mxu0
        %v630 = vadd.f32 %v566, %v629
        %v631 = vpop.f32.mrf.mxu0
        %v632 = vadd.f32 %v566, %v631
        %633 = vmatmul.bf16.gmra.mxu0 %v583
        %v634 = vpop.f32.mrf.mxu0
        %v635 = vadd.f32 %v566, %v634
        %v636 = vpop.f32.mrf.mxu0
        %v637 = vadd.f32 %v566, %v636
        %638 = vmatmul.bf16.gmra.mxu0 %v586
        %v639 = vpop.f32.mrf.mxu0
        %v640 = vadd.f32 %v566, %v639
        %v641 = vpop.f32.mrf.mxu0
        %v642 = vadd.f32 %v566, %v641
        %643 = vmatmul.bf16.gmra.mxu0 %v589
        %v644 = vpop.f32.mrf.mxu0
        %v645 = vadd.f32 %v566, %v644
        %v646 = vpop.f32.mrf.mxu0
        %v647 = vadd.f32 %v566, %v646
        %648 = vdwg.mxu0
        %649 = vst [vmem:[%s300] sm:$0xff] %v601
        %650 = vst [vmem:[%s300 + $0x8] sm:$0xff] %v630
        %651 = vst [vmem:[%s300 + $0x10] sm:$0xff] %v603
        %652 = vst [vmem:[%s300 + $0x18] sm:$0xff] %v632
        %653 = vst [vmem:[%s300 + $0x20] sm:$0xff] %v606
        %654 = vst [vmem:[%s300 + $0x28] sm:$0xff] %v635
        %655 = vst [vmem:[%s300 + $0x30] sm:$0xff] %v608
        %656 = vst [vmem:[%s300 + $0x38] sm:$0xff] %v637
        %657 = vst [vmem:[%s300 + $0x40] sm:$0xff] %v611
        %658 = vst [vmem:[%s300 + $0x48] sm:$0xff] %v640
        %659 = vst [vmem:[%s300 + $0x50] sm:$0xff] %v613
        %660 = vst [vmem:[%s300 + $0x58] sm:$0xff] %v642
        %661 = vst [vmem:[%s300 + $0x60] sm:$0xff] %v616
        %662 = vst [vmem:[%s300 + $0x68] sm:$0xff] %v645
        %663 = vst [vmem:[%s300 + $0x70] sm:$0xff] %v618
        %664 = vst [vmem:[%s300 + $0x78] sm:$0xff] %v647
        %s665 = sand.u32 %s183, 1
        %s666 = scalar_lea.sflag [#allocation3], %s665
        %s667 = sand.u32 %s183, 1
        %s668 = smul.addr %s667, 128
        %s669 = scalar_lea.vmem [#allocation2], %s668
        %s670 = smul.u32 8, %s23
        %p671 = scmp.lt.s32.totalorder %s670, 15
        %s672 = scalar_select %p671, %s670, 15
        %s673 = smul.addr %s672, 8
        %s674 = scalar_lea.vmem %s8, %s673
        // Predicated region
        $region49: #{wae_forward.3} parent=47 // pred_check
          %p675 = pneg %p193
        $region50: #{wae_forward.3} parent=47 // pred_check_branch
          %677 = sbr.rel (%p675) target = $region52
        $region51: #{wae_forward.3} parent=47 // pred_region
          %s678 = smul.u32 8, %s23
          %680 = vsyncadd %s666, 0
          %s681 = smul.addr %s678, 2
          %s682 = smul.addr %s681, 8
          %s683 = scalar_lea.hbm %s7, %s682
          %s684 = sshll.u32 %s669, 4
          %s685 = int_to_ptr.vmem [resolvable:$true] %s684
          %s686 = sshll.u32 %s683, 4
          %s687 = int_to_ptr.hbm [resolvable:$true] %s686
          %692 = dma.vmem_to_hbm [thread:$0]  %s685, 2048, %s687, %s666, 256, 256, 16
        $region52: #{wae_forward.3} parent=47 // pred_fallthru
          _
        // Predicated region
        $region53: #{wae_forward.3} parent=47 // pred_check
          %p693 = pneg %p219
        $region54: #{wae_forward.3} parent=47 // pred_check_branch
          %695 = sbr.rel (%p693) target = $region56
        $region55: #{wae_forward.3} parent=47 // pred_region
          %s696 = smul.u32 8, %s23
        $region56: #{wae_forward.3} parent=47 // pred_fallthru
          _
      $region48: #{wae_forward.3} parent=5 // pred_fallthru
        _
      %p697 = scmp.le.s32.totalorder 2, %s18
      // Predicated region
      $region57: #{wae_forward.3} parent=5 // pred_check
        %p698 = pneg %p697
      $region58: #{wae_forward.3} parent=5 // pred_check_branch
        %700 = sbr.rel (%p698) target = $region60
      $region59: #{wae_forward.3} parent=5 // pred_region
        %s701 = ssub.s32 %s18, 2
        // Predicated region
        $region61: #{wae_forward.3} parent=59 // pred_check
          %p702 = pneg %p199
        $region62: #{wae_forward.3} parent=59 // pred_check_branch
          %704 = sbr.rel (%p702) target = $region64
        $region63: #{wae_forward.3} parent=59 // pred_region
          %s705 = sand.u32 %s184, 1
          %s706 = scalar_lea.sflag [#allocation3], %s705
          %s707 = sand.u32 %s184, 1
          %s708 = smul.addr %s707, 128
          %s709 = scalar_lea.vmem [#allocation2], %s708
          %711 = dma.done %s706, 2048
        $region64: #{wae_forward.3} parent=59 // pred_fallthru
          _
        // Predicated region
        $region65: #{wae_forward.3} parent=59 // pred_check
          %p712 = pneg %p225
        $region66: #{wae_forward.3} parent=59 // pred_check_branch
          %714 = sbr.rel (%p712) target = $region68
        $region67: #{wae_forward.3} parent=59 // pred_region
          %s715 = smul.u32 8, %s24
          %p716 = scmp.lt.s32.totalorder %s715, 15
          %s717 = scalar_select %p716, %s715, 15
          %s718 = smul.addr %s717, 8
          %s719 = scalar_lea.vmem %s8, %s718
        $region68: #{wae_forward.3} parent=59 // pred_fallthru
          _
      $region60: #{wae_forward.3} parent=5 // pred_fallthru
        _
    $region6: #{wae_forward.3} parent=1 // loop_footer
      %s22 = sadd.s32 1, %s18
    $region7: #{wae_forward.3} parent=1 // loop_footer_branch
      %17 = sbr.rel target = $region3
    $region8: #{wae_forward.3} parent=1 // loop_exit
      _
    %720 = vsyncpa [#allocation3], 1
    %s721 = scalar_lea.sflag [#allocation3], 1
    %722 = vsyncpa %s721, 1

</llo_original>
